<compile_context>
chip_gen: v7x
topology: tpu7x:2x2x1
jax: 0.10.0
libtpu: 0.0.40
codegen_flags: <defaults>
</compile_context>

<pallas_src>
import math

import jax
import jax.numpy as jnp
from jax.experimental import pallas as pl
from jax.experimental.pallas import tpu as pltpu


def pairwize_kernel(hcat_ref, vecs_ref, szcat_ref, wmat_ref, wvec_ref, out_ref):
    # hcat_ref : (2, TB*S, E)   token hiddens, axis0 = mention-1 / mention-2
    # vecs_ref : (6, TB, E)     [first1, last1, node1, first2, last2, node2]
    # szcat_ref: (2, TB, 1)     mention sizes (int32)
    # wmat_ref : (13E+4H, H)    [wa1; wa2; wa3; wp1(12 E-row blocks); wp2; wp3]
    # wvec_ref : (16, H)        [walpha^T; ba1; ba2; ba3; bp1; bp2; bp3; wout^T; bout; 0-pad]
    # out_ref  : (TB, 1)
    _, TBS, E = hcat_ref.shape
    _, TB, _ = szcat_ref.shape
    S = TBS // TB
    H = wmat_ref.shape[1]
    N = 2 * TBS

    # Load each packed operand once; all further slicing is on values (free-ish).
    wmat = wmat_ref[...]
    wvec = wvec_ref[...]
    vecs = vecs_ref[...]

    o = 0
    wa1 = wmat[o:o + E]; o += E
    wa2 = wmat[o:o + H]; o += H
    wa3 = wmat[o:o + H]; o += H
    wp1_off = o;         o += 12 * E
    wp2 = wmat[o:o + H]; o += H
    wp3 = wmat[o:o + H]; o += H

    walpha = wvec[0:1]                      # (1, H)  == w_alpha.weight^T
    ba1, ba2, ba3 = wvec[1:2], wvec[2:3], wvec[3:4]
    bp1, bp2, bp3 = wvec[4:5], wvec[5:6], wvec[6:7]
    wout_t = wvec[7:8]                      # (1, H)  == W.weight^T (f_out_dim == 1)
    bout = wvec[8:9, 0:1]                   # (1, 1)

    def dot(a, b):
        return jnp.dot(a, b, preferred_element_type=jnp.float32)

    # ---- fused attend MLP over BOTH mentions: (2*TB*S, E) in one pass -------
    h2d = hcat_ref[...].reshape(N, E)
    a = jnp.maximum(dot(h2d, wa1) + ba1, 0.0)
    a = jnp.maximum(dot(a, wa2) + ba2, 0.0)
    a = jnp.maximum(dot(a, wa3) + ba3, 0.0)          # (N, H)

    # w_alpha as VPU multiply + lane (XLU) reduce; bias omitted (softmax-shift
    # invariant, cancels exactly).
    att_w = jnp.sum(a * walpha, axis=-1, keepdims=True).reshape(2 * TB, S)

    # clean_attnd_on_zero: large-negative (finite) mask beyond each span length.
    pos = jax.lax.broadcasted_iota(jnp.int32, (2 * TB, S), 1)
    sz = szcat_ref[...].reshape(2 * TB, 1)
    att_w = jnp.where(pos < sz, att_w, -1e30)

    # softmax over the span axis (reciprocal instead of divide;
    # approx=True would move it to the EUP if looser tolerance is acceptable).
    m = jnp.max(att_w, axis=1, keepdims=True)
    e = jnp.exp(att_w - m)
    att = e * pl.reciprocal(jnp.sum(e, axis=1, keepdims=True), approx=False)

    # attention-weighted sum of token hiddens -> (2*TB, E)
    att_sum = (h2d.reshape(2 * TB, S, E) * att.reshape(2 * TB, S, 1)).sum(axis=1)

    # ---- pairwize layer 1 as a sum of 12 (E,H)-block matmuls ----------------
    # feat = [f1, l1, att1, n1, f2, l2, att2, n2, f1*f2, l1*l2, att1*att2, n1*n2]
    # is never materialized; no lane-axis concatenation.
    f1, l1, n1 = vecs[0], vecs[1], vecs[2]
    f2, l2, n2 = vecs[3], vecs[4], vecs[5]
    att1, att2 = att_sum[:TB], att_sum[TB:]

    chunks = (f1, l1, att1, n1, f2, l2, att2, n2,
              f1 * f2, l1 * l2, att1 * att2, n1 * n2)
    acc = dot(chunks[0], wmat[wp1_off:wp1_off + E])
    for k in range(1, 12):
        acc = acc + dot(chunks[k], wmat[wp1_off + k * E:wp1_off + (k + 1) * E])

    x = jnp.maximum(acc + bp1, 0.0)
    x = jnp.maximum(dot(x, wp2) + bp2, 0.0)
    x = jnp.maximum(dot(x, wp3) + bp3, 0.0)

    # final W (f_out_dim == 1): VPU multiply + lane reduce instead of N=1 matmul
    out_ref[...] = jnp.sum(x * wout_t, axis=-1, keepdims=True) + bout


def _row(v, width):
    v = jnp.asarray(v, jnp.float32).reshape(1, -1)
    return jnp.pad(v, ((0, 0), (0, width - v.shape[1])))


def pack_params(params):
    """Pack the 16 weight/bias tensors into two contiguous arrays."""
    E = params["wa1"].shape[0]
    H = params["wa1"].shape[1]
    assert params["wout"].shape[1] == 1, "kernel implements f_out_dim == 1"
    wmat = jnp.concatenate(
        [params["wa1"], params["wa2"], params["wa3"],
         params["wp1"], params["wp2"], params["wp3"]], axis=0)      # (13E+4H, H)
    wvec = jnp.concatenate(
        [_row(params["walpha"].T, H),
         _row(params["ba1"], H), _row(params["ba2"], H), _row(params["ba3"], H),
         _row(params["bp1"], H), _row(params["bp2"], H), _row(params["bp3"], H),
         _row(params["wout"].T, H),
         _row(params["bout"], H)], axis=0)                          # (9, H)
    wvec = jnp.pad(wvec, ((0, 16 - wvec.shape[0]), (0, 0)))         # (16, H)
    return wmat, wvec


def pairwise_forward(params, h1, h2, f1, l1, f2, l2, n1, n2, sz1, sz2):
    B, S, E = h1.shape
    H = params["wa1"].shape[1]
    O = params["wout"].shape[1]
    assert O == 1

    # Batch tile (pairs per grid step). For the demo B == TB; for thousands of
    # pairs the grid pipelines DMA against compute and shards across v7x cores.
    TB = B if B <= 128 else 128
    assert B % TB == 0
    grid = (B // TB,)

    # ---- pack the 26 small operands into 5 arrays (5 DMAs total) ------------
    hcat = jnp.stack([h1.reshape(B * S, E), h2.reshape(B * S, E)], axis=0)  # (2, B*S, E)
    vecs = jnp.stack([f1, l1, n1, f2, l2, n2], axis=0)                      # (6, B, E)
    szcat = jnp.stack([sz1, sz2], axis=0)                                   # (2, B, 1)
    wmat, wvec = pack_params(params)

    in_specs = [
        pl.BlockSpec((2, TB * S, E), lambda i: (0, i, 0)),
        pl.BlockSpec((6, TB, E), lambda i: (0, i, 0)),
        pl.BlockSpec((2, TB, 1), lambda i: (0, i, 0)),
        pl.BlockSpec(wmat.shape, lambda i: (0, 0)),   # weights resident (block idx const)
        pl.BlockSpec(wvec.shape, lambda i: (0, 0)),
    ]
    out_specs = pl.BlockSpec((TB, O), lambda i: (i, 0))

    return pl.pallas_call(
        pairwize_kernel,
        out_shape=jax.ShapeDtypeStruct((B, O), jnp.float32),
        grid_spec=pltpu.PrefetchScalarGridSpec(
            num_scalar_prefetch=0, grid=grid,
            in_specs=in_specs, out_specs=out_specs),
        compiler_params=pltpu.CompilerParams(
            dimension_semantics=("parallel",)),
    )(hcat, vecs, szcat, wmat, wvec)


# ----------------------------- pure-JAX reference -----------------------------

def reference_forward(params, h1, h2, f1, l1, f2, l2, n1, n2, sz1, sz2):
    B, S, E = h1.shape

    def mlp3(x, w1, b1, w2, b2, w3, b3):
        x = jnp.maximum(x @ w1 + b1, 0.0)
        x = jnp.maximum(x @ w2 + b2, 0.0)
        x = jnp.maximum(x @ w3 + b3, 0.0)
        return x

    def attend(h, sz):
        a = mlp3(h.reshape(B * S, E), params["wa1"], params["ba1"],
                 params["wa2"], params["ba2"], params["wa3"], params["ba3"])
        att_w = (a @ params["walpha"] + params["balpha"]).reshape(B, S)
        pos = jnp.arange(S, dtype=jnp.int32)[None, :]
        att_w = jnp.where(pos < sz, att_w, -jnp.inf)
        att_soft = jax.nn.softmax(att_w, axis=1)
        return jnp.sum(h * att_soft[:, :, None], axis=1)

    g1 = jnp.concatenate([f1, l1, attend(h1, sz1), n1], axis=1)
    g2 = jnp.concatenate([f2, l2, attend(h2, sz2), n2], axis=1)
    feat = jnp.concatenate([g1, g2, g1 * g2], axis=1)
    x = mlp3(feat, params["wp1"], params["bp1"], params["wp2"], params["bp2"],
             params["wp3"], params["bp3"])
    return x @ params["wout"] + params["bout"]


# ----------------------------- param / data setup -----------------------------

def init_params(key, embed_size, f_hid_dim, f_out_dim):
    ks = iter(jax.random.split(key, 32))

    def linear(fan_in, fan_out):
        bound = 1.0 / math.sqrt(fan_in)
        w = jax.random.uniform(next(ks), (fan_in, fan_out), jnp.float32,
                               -bound, bound)
        b = jax.random.uniform(next(ks), (1, fan_out), jnp.float32,
                               -bound, bound)
        return w, b

    p = {}
    # attend = get_sequential(embed_size, f_hid_dim)
    p["wa1"], p["ba1"] = linear(embed_size, f_hid_dim)
    p["wa2"], p["ba2"] = linear(f_hid_dim, f_hid_dim)
    p["wa3"], p["ba3"] = linear(f_hid_dim, f_hid_dim)
    # w_alpha = Linear(f_hid_dim, 1)
    p["walpha"], p["balpha"] = linear(f_hid_dim, 1)
    # pairwize = get_sequential(12 * f_in_dim, f_hid_dim)  (f_in_dim == embed_size)
    p["wp1"], p["bp1"] = linear(12 * embed_size, f_hid_dim)
    p["wp2"], p["bp2"] = linear(f_hid_dim, f_hid_dim)
    p["wp3"], p["bp3"] = linear(f_hid_dim, f_hid_dim)
    # W = Linear(f_hid_dim, f_out_dim)
    p["wout"], p["bout"] = linear(f_hid_dim, f_out_dim)
    return p


def get_gold_labels(key, batch_size):
    # TODO(synk): real labels compare mention.coref_chain python objects;
    # synthesized here as wrapper glue.
    return jax.random.bernoulli(key, 0.5, (batch_size,)).astype(jnp.int32)


if __name__ == "__main__":
    B, S, E, H, O = 8, 8, 32, 32, 1     # batch, max_ment_span, f_in/embed, f_hid, f_out

    key = jax.random.PRNGKey(0)
    kp, kh1, kh2, ks1, ks2, kf1, kl1, kf2, kl2, kn1, kn2, kg = jax.random.split(key, 12)

    params = init_params(kp, E, H, O)

    sz1 = jax.random.randint(ks1, (B, 1), 1, S + 1, dtype=jnp.int32)
    sz2 = jax.random.randint(ks2, (B, 1), 1, S + 1, dtype=jnp.int32)

    pos = jnp.arange(S, dtype=jnp.int32)[None, :, None]
    h1 = jax.random.normal(kh1, (B, S, E), jnp.float32) * (pos < sz1[:, :, None])
    h2 = jax.random.normal(kh2, (B, S, E), jnp.float32) * (pos < sz2[:, :, None])

    f1 = jax.random.normal(kf1, (B, E), jnp.float32)
    l1 = jax.random.normal(kl1, (B, E), jnp.float32)
    f2 = jax.random.normal(kf2, (B, E), jnp.float32)
    l2 = jax.random.normal(kl2, (B, E), jnp.float32)
    n1 = jax.random.normal(kn1, (B, E), jnp.float32)   # stand-in for GAT node feats
    n2 = jax.random.normal(kn2, (B, E), jnp.float32)

    gold_labels = get_gold_labels(kg, B)

    prediction = pairwise_forward(params, h1, h2, f1, l1, f2, l2, n1, n2, sz1, sz2)
    prediction = jax.block_until_ready(prediction)
    gold_labels = jax.block_until_ready(gold_labels)

    ref = reference_forward(params, h1, h2, f1, l1, f2, l2, n1, n2, sz1, sz2)
    assert prediction.shape == (B, O)
    assert jnp.allclose(prediction, ref, rtol=1e-4, atol=1e-4), (
        "mismatch vs reference")

    print("KERNEL_OK")
</pallas_src>

<mosaic_0001>
module attributes {stable_mosaic.version = 11 : i64} {
  func.func @pairwize_kernel(%arg0: i32, %arg1: memref<2x64x32xf32, #tpu.memory_space<vmem>>, %arg2: memref<6x8x32xf32, #tpu.memory_space<vmem>>, %arg3: memref<2x8x1xi32, #tpu.memory_space<vmem>>, %arg4: memref<544x32xf32, #tpu.memory_space<vmem>>, %arg5: memref<16x32xf32, #tpu.memory_space<vmem>>, %arg6: memref<8x1xf32, #tpu.memory_space<vmem>>) attributes {dimension_semantics = [#tpu.dimension_semantics<parallel>], iteration_bounds = array<i64: 1>, scalar_prefetch = 0 : i64, scratch_operands = 0 : i64, tpu.core_type = #tpu.core_type<tc>, window_params = [{transform_indices = @transform_0, window_bounds = array<i64: 2, 64, 32>}, {transform_indices = @transform_1, window_bounds = array<i64: 6, 8, 32>}, {transform_indices = @transform_2, window_bounds = array<i64: 2, 8, 1>}, {pipeline_mode = #tpu.pipeline_mode<synchronous>, transform_indices = @transform_3, window_bounds = array<i64: 544, 32>}, {pipeline_mode = #tpu.pipeline_mode<synchronous>, transform_indices = @transform_4, window_bounds = array<i64: 16, 32>}, {transform_indices = @transform_5, window_bounds = array<i64: 8, 1>}]} {
    %c0 = arith.constant 0 : index
    %c0_0 = arith.constant 0 : index
    %0 = vector.load %arg4[%c0, %c0_0] : memref<544x32xf32, #tpu.memory_space<vmem>>, vector<544x32xf32>
    %c0_1 = arith.constant 0 : index
    %c0_2 = arith.constant 0 : index
    %1 = vector.load %arg5[%c0_1, %c0_2] : memref<16x32xf32, #tpu.memory_space<vmem>>, vector<16x32xf32>
    %c0_3 = arith.constant 0 : index
    %c0_4 = arith.constant 0 : index
    %c0_5 = arith.constant 0 : index
    %2 = vector.load %arg2[%c0_3, %c0_4, %c0_5] : memref<6x8x32xf32, #tpu.memory_space<vmem>>, vector<6x8x32xf32>
    %3 = vector.extract_strided_slice %0 {offsets = [0, 0], sizes = [32, 32], strides = [1, 1]} : vector<544x32xf32> to vector<32x32xf32>
    %4 = vector.extract_strided_slice %0 {offsets = [32, 0], sizes = [32, 32], strides = [1, 1]} : vector<544x32xf32> to vector<32x32xf32>
    %5 = vector.extract_strided_slice %0 {offsets = [64, 0], sizes = [32, 32], strides = [1, 1]} : vector<544x32xf32> to vector<32x32xf32>
    %6 = vector.extract_strided_slice %0 {offsets = [480, 0], sizes = [32, 32], strides = [1, 1]} : vector<544x32xf32> to vector<32x32xf32>
    %7 = vector.extract_strided_slice %0 {offsets = [512, 0], sizes = [32, 32], strides = [1, 1]} : vector<544x32xf32> to vector<32x32xf32>
    %8 = vector.extract_strided_slice %1 {offsets = [0, 0], sizes = [1, 32], strides = [1, 1]} : vector<16x32xf32> to vector<1x32xf32>
    %9 = vector.extract_strided_slice %1 {offsets = [1, 0], sizes = [1, 32], strides = [1, 1]} : vector<16x32xf32> to vector<1x32xf32>
    %10 = vector.extract_strided_slice %1 {offsets = [2, 0], sizes = [1, 32], strides = [1, 1]} : vector<16x32xf32> to vector<1x32xf32>
    %11 = vector.extract_strided_slice %1 {offsets = [3, 0], sizes = [1, 32], strides = [1, 1]} : vector<16x32xf32> to vector<1x32xf32>
    %12 = vector.extract_strided_slice %1 {offsets = [4, 0], sizes = [1, 32], strides = [1, 1]} : vector<16x32xf32> to vector<1x32xf32>
    %13 = vector.extract_strided_slice %1 {offsets = [5, 0], sizes = [1, 32], strides = [1, 1]} : vector<16x32xf32> to vector<1x32xf32>
    %14 = vector.extract_strided_slice %1 {offsets = [6, 0], sizes = [1, 32], strides = [1, 1]} : vector<16x32xf32> to vector<1x32xf32>
    %15 = vector.extract_strided_slice %1 {offsets = [7, 0], sizes = [1, 32], strides = [1, 1]} : vector<16x32xf32> to vector<1x32xf32>
    %16 = vector.extract_strided_slice %1 {offsets = [8, 0], sizes = [1, 1], strides = [1, 1]} : vector<16x32xf32> to vector<1x1xf32>
    %c0_6 = arith.constant 0 : index
    %c0_7 = arith.constant 0 : index
    %c0_8 = arith.constant 0 : index
    %17 = vector.load %arg1[%c0_6, %c0_7, %c0_8] : memref<2x64x32xf32, #tpu.memory_space<vmem>>, vector<2x64x32xf32>
    %18 = vector.shape_cast %17 : vector<2x64x32xf32> to vector<128x32xf32>
    %cst = arith.constant dense<0.000000e+00> : vector<128x32xf32>
    %19 = tpu.matmul %18, %3, %cst {dimension_numbers = #tpu.dot_dimension_numbers<[1], [0], [0], [1], [0, 0, 1, 1], [], []>} : vector<128x32xf32>, vector<32x32xf32>, vector<128x32xf32> -> vector<128x32xf32>
    %20 = vector.broadcast %9 : vector<1x32xf32> to vector<128x32xf32>
    %21 = arith.addf %19, %20 : vector<128x32xf32>
    %cst_9 = arith.constant 0.000000e+00 : f32
    %22 = vector.broadcast %cst_9 : f32 to vector<128x32xf32>
    %23 = arith.maximumf %21, %22 : vector<128x32xf32>
    %cst_10 = arith.constant dense<0.000000e+00> : vector<128x32xf32>
    %24 = tpu.matmul %23, %4, %cst_10 {dimension_numbers = #tpu.dot_dimension_numbers<[1], [0], [0], [1], [0, 0, 1, 1], [], []>} : vector<128x32xf32>, vector<32x32xf32>, vector<128x32xf32> -> vector<128x32xf32>
    %25 = vector.broadcast %10 : vector<1x32xf32> to vector<128x32xf32>
    %26 = arith.addf %24, %25 : vector<128x32xf32>
    %cst_11 = arith.constant 0.000000e+00 : f32
    %27 = vector.broadcast %cst_11 : f32 to vector<128x32xf32>
    %28 = arith.maximumf %26, %27 : vector<128x32xf32>
    %cst_12 = arith.constant dense<0.000000e+00> : vector<128x32xf32>
    %29 = tpu.matmul %28, %5, %cst_12 {dimension_numbers = #tpu.dot_dimension_numbers<[1], [0], [0], [1], [0, 0, 1, 1], [], []>} : vector<128x32xf32>, vector<32x32xf32>, vector<128x32xf32> -> vector<128x32xf32>
    %30 = vector.broadcast %11 : vector<1x32xf32> to vector<128x32xf32>
    %31 = arith.addf %29, %30 : vector<128x32xf32>
    %cst_13 = arith.constant 0.000000e+00 : f32
    %32 = vector.broadcast %cst_13 : f32 to vector<128x32xf32>
    %33 = arith.maximumf %31, %32 : vector<128x32xf32>
    %34 = vector.broadcast %8 : vector<1x32xf32> to vector<128x32xf32>
    %35 = arith.mulf %33, %34 : vector<128x32xf32>
    %cst_14 = arith.constant dense<0.000000e+00> : vector<128xf32>
    %36 = vector.multi_reduction <add>, %35, %cst_14 [1] : vector<128x32xf32> to vector<128xf32>
    %37 = vector.shape_cast %36 : vector<128xf32> to vector<128x1xf32>
    %38 = vector.shape_cast %37 : vector<128x1xf32> to vector<16x8xf32>
    %39 = tpu.iota {dimensions = array<i32: 1>} : vector<16x8xi32>
    %c0_15 = arith.constant 0 : index
    %c0_16 = arith.constant 0 : index
    %c0_17 = arith.constant 0 : index
    %40 = vector.load %arg3[%c0_15, %c0_16, %c0_17] : memref<2x8x1xi32, #tpu.memory_space<vmem>>, vector<2x8x1xi32>
    %41 = vector.shape_cast %40 : vector<2x8x1xi32> to vector<16x1xi32>
    %42 = vector.broadcast %41 : vector<16x1xi32> to vector<16x8xi32>
    %43 = arith.cmpi slt, %39, %42 : vector<16x8xi32>
    %cst_18 = arith.constant -1.000000e+30 : f32
    %44 = vector.broadcast %cst_18 : f32 to vector<16x8xf32>
    %45 = arith.select %43, %38, %44 : vector<16x8xi1>, vector<16x8xf32>
    %cst_19 = arith.constant dense<0xFF800000> : vector<16xf32>
    %46 = vector.multi_reduction <maximumf>, %45, %cst_19 [1] : vector<16x8xf32> to vector<16xf32>
    %47 = vector.shape_cast %46 : vector<16xf32> to vector<16x1xf32>
    %48 = vector.broadcast %47 : vector<16x1xf32> to vector<16x8xf32>
    %49 = arith.subf %45, %48 : vector<16x8xf32>
    %50 = math.exp %49 : vector<16x8xf32>
    %cst_20 = arith.constant dense<0.000000e+00> : vector<16xf32>
    %51 = vector.multi_reduction <add>, %50, %cst_20 [1] : vector<16x8xf32> to vector<16xf32>
    %52 = vector.shape_cast %51 : vector<16xf32> to vector<16x1xf32>
    %53 = tpu.reciprocal %52 : vector<16x1xf32> -> vector<16x1xf32>
    %54 = vector.broadcast %53 : vector<16x1xf32> to vector<16x8xf32>
    %55 = arith.mulf %50, %54 : vector<16x8xf32>
    %56 = vector.shape_cast %18 : vector<128x32xf32> to vector<16x8x32xf32>
    %57 = vector.shape_cast %55 : vector<16x8xf32> to vector<16x8x1xf32>
    %58 = vector.broadcast %57 : vector<16x8x1xf32> to vector<16x8x32xf32>
    %59 = arith.mulf %56, %58 : vector<16x8x32xf32>
    %cst_21 = arith.constant dense<0.000000e+00> : vector<16x32xf32>
    %60 = vector.multi_reduction <add>, %59, %cst_21 [1] : vector<16x8x32xf32> to vector<16x32xf32>
    %61 = vector.extract_strided_slice %2 {offsets = [0, 0, 0], sizes = [1, 8, 32], strides = [1, 1, 1]} : vector<6x8x32xf32> to vector<1x8x32xf32>
    %62 = vector.shape_cast %61 : vector<1x8x32xf32> to vector<8x32xf32>
    %63 = vector.extract_strided_slice %2 {offsets = [1, 0, 0], sizes = [1, 8, 32], strides = [1, 1, 1]} : vector<6x8x32xf32> to vector<1x8x32xf32>
    %64 = vector.shape_cast %63 : vector<1x8x32xf32> to vector<8x32xf32>
    %65 = vector.extract_strided_slice %2 {offsets = [2, 0, 0], sizes = [1, 8, 32], strides = [1, 1, 1]} : vector<6x8x32xf32> to vector<1x8x32xf32>
    %66 = vector.shape_cast %65 : vector<1x8x32xf32> to vector<8x32xf32>
    %67 = vector.extract_strided_slice %2 {offsets = [3, 0, 0], sizes = [1, 8, 32], strides = [1, 1, 1]} : vector<6x8x32xf32> to vector<1x8x32xf32>
    %68 = vector.shape_cast %67 : vector<1x8x32xf32> to vector<8x32xf32>
    %69 = vector.extract_strided_slice %2 {offsets = [4, 0, 0], sizes = [1, 8, 32], strides = [1, 1, 1]} : vector<6x8x32xf32> to vector<1x8x32xf32>
    %70 = vector.shape_cast %69 : vector<1x8x32xf32> to vector<8x32xf32>
    %71 = vector.extract_strided_slice %2 {offsets = [5, 0, 0], sizes = [1, 8, 32], strides = [1, 1, 1]} : vector<6x8x32xf32> to vector<1x8x32xf32>
    %72 = vector.shape_cast %71 : vector<1x8x32xf32> to vector<8x32xf32>
    %73 = vector.extract_strided_slice %60 {offsets = [0, 0], sizes = [8, 32], strides = [1, 1]} : vector<16x32xf32> to vector<8x32xf32>
    %74 = vector.extract_strided_slice %60 {offsets = [8, 0], sizes = [8, 32], strides = [1, 1]} : vector<16x32xf32> to vector<8x32xf32>
    %75 = arith.mulf %62, %68 : vector<8x32xf32>
    %76 = arith.mulf %64, %70 : vector<8x32xf32>
    %77 = arith.mulf %73, %74 : vector<8x32xf32>
    %78 = arith.mulf %66, %72 : vector<8x32xf32>
    %79 = vector.extract_strided_slice %0 {offsets = [96, 0], sizes = [32, 32], strides = [1, 1]} : vector<544x32xf32> to vector<32x32xf32>
    %cst_22 = arith.constant dense<0.000000e+00> : vector<8x32xf32>
    %80 = tpu.matmul %62, %79, %cst_22 {dimension_numbers = #tpu.dot_dimension_numbers<[1], [0], [0], [1], [0, 0, 1, 1], [], []>} : vector<8x32xf32>, vector<32x32xf32>, vector<8x32xf32> -> vector<8x32xf32>
    %81 = vector.extract_strided_slice %0 {offsets = [128, 0], sizes = [32, 32], strides = [1, 1]} : vector<544x32xf32> to vector<32x32xf32>
    %cst_23 = arith.constant dense<0.000000e+00> : vector<8x32xf32>
    %82 = tpu.matmul %64, %81, %cst_23 {dimension_numbers = #tpu.dot_dimension_numbers<[1], [0], [0], [1], [0, 0, 1, 1], [], []>} : vector<8x32xf32>, vector<32x32xf32>, vector<8x32xf32> -> vector<8x32xf32>
    %83 = arith.addf %80, %82 : vector<8x32xf32>
    %84 = vector.extract_strided_slice %0 {offsets = [160, 0], sizes = [32, 32], strides = [1, 1]} : vector<544x32xf32> to vector<32x32xf32>
    %cst_24 = arith.constant dense<0.000000e+00> : vector<8x32xf32>
    %85 = tpu.matmul %73, %84, %cst_24 {dimension_numbers = #tpu.dot_dimension_numbers<[1], [0], [0], [1], [0, 0, 1, 1], [], []>} : vector<8x32xf32>, vector<32x32xf32>, vector<8x32xf32> -> vector<8x32xf32>
    %86 = arith.addf %83, %85 : vector<8x32xf32>
    %87 = vector.extract_strided_slice %0 {offsets = [192, 0], sizes = [32, 32], strides = [1, 1]} : vector<544x32xf32> to vector<32x32xf32>
    %cst_25 = arith.constant dense<0.000000e+00> : vector<8x32xf32>
    %88 = tpu.matmul %66, %87, %cst_25 {dimension_numbers = #tpu.dot_dimension_numbers<[1], [0], [0], [1], [0, 0, 1, 1], [], []>} : vector<8x32xf32>, vector<32x32xf32>, vector<8x32xf32> -> vector<8x32xf32>
    %89 = arith.addf %86, %88 : vector<8x32xf32>
    %90 = vector.extract_strided_slice %0 {offsets = [224, 0], sizes = [32, 32], strides = [1, 1]} : vector<544x32xf32> to vector<32x32xf32>
    %cst_26 = arith.constant dense<0.000000e+00> : vector<8x32xf32>
    %91 = tpu.matmul %68, %90, %cst_26 {dimension_numbers = #tpu.dot_dimension_numbers<[1], [0], [0], [1], [0, 0, 1, 1], [], []>} : vector<8x32xf32>, vector<32x32xf32>, vector<8x32xf32> -> vector<8x32xf32>
    %92 = arith.addf %89, %91 : vector<8x32xf32>
    %93 = vector.extract_strided_slice %0 {offsets = [256, 0], sizes = [32, 32], strides = [1, 1]} : vector<544x32xf32> to vector<32x32xf32>
    %cst_27 = arith.constant dense<0.000000e+00> : vector<8x32xf32>
    %94 = tpu.matmul %70, %93, %cst_27 {dimension_numbers = #tpu.dot_dimension_numbers<[1], [0], [0], [1], [0, 0, 1, 1], [], []>} : vector<8x32xf32>, vector<32x32xf32>, vector<8x32xf32> -> vector<8x32xf32>
    %95 = arith.addf %92, %94 : vector<8x32xf32>
    %96 = vector.extract_strided_slice %0 {offsets = [288, 0], sizes = [32, 32], strides = [1, 1]} : vector<544x32xf32> to vector<32x32xf32>
    %cst_28 = arith.constant dense<0.000000e+00> : vector<8x32xf32>
    %97 = tpu.matmul %74, %96, %cst_28 {dimension_numbers = #tpu.dot_dimension_numbers<[1], [0], [0], [1], [0, 0, 1, 1], [], []>} : vector<8x32xf32>, vector<32x32xf32>, vector<8x32xf32> -> vector<8x32xf32>
    %98 = arith.addf %95, %97 : vector<8x32xf32>
    %99 = vector.extract_strided_slice %0 {offsets = [320, 0], sizes = [32, 32], strides = [1, 1]} : vector<544x32xf32> to vector<32x32xf32>
    %cst_29 = arith.constant dense<0.000000e+00> : vector<8x32xf32>
    %100 = tpu.matmul %72, %99, %cst_29 {dimension_numbers = #tpu.dot_dimension_numbers<[1], [0], [0], [1], [0, 0, 1, 1], [], []>} : vector<8x32xf32>, vector<32x32xf32>, vector<8x32xf32> -> vector<8x32xf32>
    %101 = arith.addf %98, %100 : vector<8x32xf32>
    %102 = vector.extract_strided_slice %0 {offsets = [352, 0], sizes = [32, 32], strides = [1, 1]} : vector<544x32xf32> to vector<32x32xf32>
    %cst_30 = arith.constant dense<0.000000e+00> : vector<8x32xf32>
    %103 = tpu.matmul %75, %102, %cst_30 {dimension_numbers = #tpu.dot_dimension_numbers<[1], [0], [0], [1], [0, 0, 1, 1], [], []>} : vector<8x32xf32>, vector<32x32xf32>, vector<8x32xf32> -> vector<8x32xf32>
    %104 = arith.addf %101, %103 : vector<8x32xf32>
    %105 = vector.extract_strided_slice %0 {offsets = [384, 0], sizes = [32, 32], strides = [1, 1]} : vector<544x32xf32> to vector<32x32xf32>
    %cst_31 = arith.constant dense<0.000000e+00> : vector<8x32xf32>
    %106 = tpu.matmul %76, %105, %cst_31 {dimension_numbers = #tpu.dot_dimension_numbers<[1], [0], [0], [1], [0, 0, 1, 1], [], []>} : vector<8x32xf32>, vector<32x32xf32>, vector<8x32xf32> -> vector<8x32xf32>
    %107 = arith.addf %104, %106 : vector<8x32xf32>
    %108 = vector.extract_strided_slice %0 {offsets = [416, 0], sizes = [32, 32], strides = [1, 1]} : vector<544x32xf32> to vector<32x32xf32>
    %cst_32 = arith.constant dense<0.000000e+00> : vector<8x32xf32>
    %109 = tpu.matmul %77, %108, %cst_32 {dimension_numbers = #tpu.dot_dimension_numbers<[1], [0], [0], [1], [0, 0, 1, 1], [], []>} : vector<8x32xf32>, vector<32x32xf32>, vector<8x32xf32> -> vector<8x32xf32>
    %110 = arith.addf %107, %109 : vector<8x32xf32>
    %111 = vector.extract_strided_slice %0 {offsets = [448, 0], sizes = [32, 32], strides = [1, 1]} : vector<544x32xf32> to vector<32x32xf32>
    %cst_33 = arith.constant dense<0.000000e+00> : vector<8x32xf32>
    %112 = tpu.matmul %78, %111, %cst_33 {dimension_numbers = #tpu.dot_dimension_numbers<[1], [0], [0], [1], [0, 0, 1, 1], [], []>} : vector<8x32xf32>, vector<32x32xf32>, vector<8x32xf32> -> vector<8x32xf32>
    %113 = arith.addf %110, %112 : vector<8x32xf32>
    %114 = vector.broadcast %12 : vector<1x32xf32> to vector<8x32xf32>
    %115 = arith.addf %113, %114 : vector<8x32xf32>
    %cst_34 = arith.constant 0.000000e+00 : f32
    %116 = vector.broadcast %cst_34 : f32 to vector<8x32xf32>
    %117 = arith.maximumf %115, %116 : vector<8x32xf32>
    %cst_35 = arith.constant dense<0.000000e+00> : vector<8x32xf32>
    %118 = tpu.matmul %117, %6, %cst_35 {dimension_numbers = #tpu.dot_dimension_numbers<[1], [0], [0], [1], [0, 0, 1, 1], [], []>} : vector<8x32xf32>, vector<32x32xf32>, vector<8x32xf32> -> vector<8x32xf32>
    %119 = vector.broadcast %13 : vector<1x32xf32> to vector<8x32xf32>
    %120 = arith.addf %118, %119 : vector<8x32xf32>
    %cst_36 = arith.constant 0.000000e+00 : f32
    %121 = vector.broadcast %cst_36 : f32 to vector<8x32xf32>
    %122 = arith.maximumf %120, %121 : vector<8x32xf32>
    %cst_37 = arith.constant dense<0.000000e+00> : vector<8x32xf32>
    %123 = tpu.matmul %122, %7, %cst_37 {dimension_numbers = #tpu.dot_dimension_numbers<[1], [0], [0], [1], [0, 0, 1, 1], [], []>} : vector<8x32xf32>, vector<32x32xf32>, vector<8x32xf32> -> vector<8x32xf32>
    %124 = vector.broadcast %14 : vector<1x32xf32> to vector<8x32xf32>
    %125 = arith.addf %123, %124 : vector<8x32xf32>
    %cst_38 = arith.constant 0.000000e+00 : f32
    %126 = vector.broadcast %cst_38 : f32 to vector<8x32xf32>
    %127 = arith.maximumf %125, %126 : vector<8x32xf32>
    %128 = vector.broadcast %15 : vector<1x32xf32> to vector<8x32xf32>
    %129 = arith.mulf %127, %128 : vector<8x32xf32>
    %cst_39 = arith.constant dense<0.000000e+00> : vector<8xf32>
    %130 = vector.multi_reduction <add>, %129, %cst_39 [1] : vector<8x32xf32> to vector<8xf32>
    %131 = vector.shape_cast %130 : vector<8xf32> to vector<8x1xf32>
    %132 = vector.broadcast %16 : vector<1x1xf32> to vector<8x1xf32>
    %133 = arith.addf %131, %132 : vector<8x1xf32>
    %c0_40 = arith.constant 0 : index
    %c0_41 = arith.constant 0 : index
    %134 = vector.load %arg6[%c0_40, %c0_41] : memref<8x1xf32, #tpu.memory_space<vmem>>, vector<8x1xf32>
    tpu.vector_store %arg6[%c0_40, %c0_41], %133 {strides = array<i32>} : memref<8x1xf32, #tpu.memory_space<vmem>>, vector<8x1xf32>,
    return
  }
  func.func @transform_0(%arg0: i32) -> (i32, i32, i32) {
    %c0_i32 = arith.constant 0 : i32
    %c0_i32_0 = arith.constant 0 : i32
    %c0_i32_1 = arith.constant 0 : i32
    return %c0_i32, %arg0, %c0_i32_0 : i32, i32, i32
  }
  func.func @transform_1(%arg0: i32) -> (i32, i32, i32) {
    %c0_i32 = arith.constant 0 : i32
    %c0_i32_0 = arith.constant 0 : i32
    %c0_i32_1 = arith.constant 0 : i32
    return %c0_i32, %arg0, %c0_i32_0 : i32, i32, i32
  }
  func.func @transform_2(%arg0: i32) -> (i32, i32, i32) {
    %c0_i32 = arith.constant 0 : i32
    %c0_i32_0 = arith.constant 0 : i32
    %c0_i32_1 = arith.constant 0 : i32
    return %c0_i32, %arg0, %c0_i32_0 : i32, i32, i32
  }
  func.func @transform_3(%arg0: i32) -> (i32, i32) {
    %c0_i32 = arith.constant 0 : i32
    %c0_i32_0 = arith.constant 0 : i32
    %c0_i32_1 = arith.constant 0 : i32
    return %c0_i32, %c0_i32_0 : i32, i32
  }
  func.func @transform_4(%arg0: i32) -> (i32, i32) {
    %c0_i32 = arith.constant 0 : i32
    %c0_i32_0 = arith.constant 0 : i32
    %c0_i32_1 = arith.constant 0 : i32
    return %c0_i32, %c0_i32_0 : i32, i32
  }
  func.func @transform_5(%arg0: i32) -> (i32, i32) {
    %c0_i32 = arith.constant 0 : i32
    %c0_i32_0 = arith.constant 0 : i32
    return %arg0, %c0_i32 : i32, i32
  }
}

</mosaic_0001>

<llo_original>
// kernel: tpu_custom_call.1
$region0: #{tpu_custom_call.1}
  #allocation0 [shape = 'u32[]', space=smem, size = 0x4, offset = 0x4, fixed_abs, tag = 'smem constant byte address 0x4 - core index']
  #allocation1 [shape = 'u32[144,128]{1,0:T(1,128)}', space=vmem, size = 0x12000, scoped, tag = 'internal scratch']
  %s0 = inlined_call_operand.vmem [shape: f32[2,64,32], index: 0, kind: input, shape index: {}]
  %s1 = inlined_call_operand.vmem [shape: f32[6,8,32], index: 1, kind: input, shape index: {}]
  %s2 = inlined_call_operand.vmem [shape: s32[2,8,1], index: 2, kind: input, shape index: {}]
  %s3 = inlined_call_operand.vmem [shape: f32[544,32], index: 3, kind: input, shape index: {}]
  %s4 = inlined_call_operand.vmem [shape: f32[16,32], index: 4, kind: input, shape index: {}]
  %s5 = inlined_call_operand.vmem [shape: f32[8,1], index: 5, kind: output, shape index: {}]
  %s6 = sld [smem:[#allocation0]]
  $region30: #{tpu_custom_call.1} parent=0
    _
  %s8 = ssub.s32 1, %s6
  %s9 = scalar_select 0, %s8, %s6
  // Predicated region
  $region2: #{tpu_custom_call.1} parent=0 // pred_check
    _
  $region3: #{tpu_custom_call.1} parent=0 // pred_check_branch
    %11 = sbr.rel (0) target = $region5
  $region4: #{tpu_custom_call.1} parent=0 // pred_region
    _
  $region5: #{tpu_custom_call.1} parent=0 // pred_fallthru
    _
  // Predicated region
  $region6: #{tpu_custom_call.1} parent=0 // pred_check
    _
  $region7: #{tpu_custom_call.1} parent=0 // pred_check_branch
    %13 = sbr.rel (0) target = $region9
  $region8: #{tpu_custom_call.1} parent=0 // pred_region
    _
  $region9: #{tpu_custom_call.1} parent=0 // pred_fallthru
    _
  // Predicated region
  $region10: #{tpu_custom_call.1} parent=0 // pred_check
    _
  $region11: #{tpu_custom_call.1} parent=0 // pred_check_branch
    %15 = sbr.rel (0) target = $region13
  $region12: #{tpu_custom_call.1} parent=0 // pred_region
    _
  $region13: #{tpu_custom_call.1} parent=0 // pred_fallthru
    _
  // Predicated region
  $region14: #{tpu_custom_call.1} parent=0 // pred_check
    _
  $region15: #{tpu_custom_call.1} parent=0 // pred_check_branch
    %17 = sbr.rel (0) target = $region17
  $region16: #{tpu_custom_call.1} parent=0 // pred_region
    _
  $region17: #{tpu_custom_call.1} parent=0 // pred_fallthru
    _
  // Predicated region
  $region18: #{tpu_custom_call.1} parent=0 // pred_check
    _
  $region19: #{tpu_custom_call.1} parent=0 // pred_check_branch
    %19 = sbr.rel (0) target = $region21
  $region20: #{tpu_custom_call.1} parent=0 // pred_region
    _
  $region21: #{tpu_custom_call.1} parent=0 // pred_fallthru
    _
  %v20 = vld [vmem:[%s3] sm:$0xff]
  %v21 = vld [vmem:[%s3 + $0x8] sm:$0xff]
  %v22 = vld [vmem:[%s3 + $0x10] sm:$0xff]
  %v23 = vld [vmem:[%s3 + $0x18] sm:$0xff]
  %v24 = vld [vmem:[%s3 + $0x20] sm:$0xff]
  %v25 = vld [vmem:[%s3 + $0x28] sm:$0xff]
  %v26 = vld [vmem:[%s3 + $0x30] sm:$0xff]
  %v27 = vld [vmem:[%s3 + $0x38] sm:$0xff]
  %v28 = vld [vmem:[%s3 + $0x40] sm:$0xff]
  %v29 = vld [vmem:[%s3 + $0x48] sm:$0xff]
  %v30 = vld [vmem:[%s3 + $0x50] sm:$0xff]
  %v31 = vld [vmem:[%s3 + $0x58] sm:$0xff]
  %v32 = vld [vmem:[%s3 + $0x60] sm:$0xff]
  %v33 = vld [vmem:[%s3 + $0x68] sm:$0xff]
  %v34 = vld [vmem:[%s3 + $0x70] sm:$0xff]
  %v35 = vld [vmem:[%s3 + $0x78] sm:$0xff]
  %v36 = vld [vmem:[%s3 + $0x80] sm:$0xff]
  %v37 = vld [vmem:[%s3 + $0x88] sm:$0xff]
  %v38 = vld [vmem:[%s3 + $0x90] sm:$0xff]
  %v39 = vld [vmem:[%s3 + $0x98] sm:$0xff]
  %v40 = vld [vmem:[%s3 + $0xa0] sm:$0xff]
  %v41 = vld [vmem:[%s3 + $0xa8] sm:$0xff]
  %v42 = vld [vmem:[%s3 + $0xb0] sm:$0xff]
  %v43 = vld [vmem:[%s3 + $0xb8] sm:$0xff]
  %v44 = vld [vmem:[%s3 + $0xc0] sm:$0xff]
  %v45 = vld [vmem:[%s3 + $0xc8] sm:$0xff]
  %v46 = vld [vmem:[%s3 + $0xd0] sm:$0xff]
  %v47 = vld [vmem:[%s3 + $0xd8] sm:$0xff]
  %v48 = vld [vmem:[%s3 + $0xe0] sm:$0xff]
  %v49 = vld [vmem:[%s3 + $0xe8] sm:$0xff]
  %v50 = vld [vmem:[%s3 + $0xf0] sm:$0xff]
  %v51 = vld [vmem:[%s3 + $0xf8] sm:$0xff]
  %v52 = vld [vmem:[%s3 + $0x100] sm:$0xff]
  %v53 = vld [vmem:[%s3 + $0x108] sm:$0xff]
  %v54 = vld [vmem:[%s3 + $0x110] sm:$0xff]
  %v55 = vld [vmem:[%s3 + $0x118] sm:$0xff]
  %v56 = vld [vmem:[%s3 + $0x120] sm:$0xff]
  %v57 = vld [vmem:[%s3 + $0x128] sm:$0xff]
  %v58 = vld [vmem:[%s3 + $0x130] sm:$0xff]
  %v59 = vld [vmem:[%s3 + $0x138] sm:$0xff]
  %v60 = vld [vmem:[%s3 + $0x140] sm:$0xff]
  %v61 = vld [vmem:[%s3 + $0x148] sm:$0xff]
  %v62 = vld [vmem:[%s3 + $0x150] sm:$0xff]
  %v63 = vld [vmem:[%s3 + $0x158] sm:$0xff]
  %v64 = vld [vmem:[%s3 + $0x160] sm:$0xff]
  %v65 = vld [vmem:[%s3 + $0x168] sm:$0xff]
  %v66 = vld [vmem:[%s3 + $0x170] sm:$0xff]
  %v67 = vld [vmem:[%s3 + $0x178] sm:$0xff]
  %v68 = vld [vmem:[%s3 + $0x180] sm:$0xff]
  %v69 = vld [vmem:[%s3 + $0x188] sm:$0xff]
  %v70 = vld [vmem:[%s3 + $0x190] sm:$0xff]
  %v71 = vld [vmem:[%s3 + $0x198] sm:$0xff]
  %v72 = vld [vmem:[%s3 + $0x1a0] sm:$0xff]
  %v73 = vld [vmem:[%s3 + $0x1a8] sm:$0xff]
  %v74 = vld [vmem:[%s3 + $0x1b0] sm:$0xff]
  %v75 = vld [vmem:[%s3 + $0x1b8] sm:$0xff]
  %v76 = vld [vmem:[%s3 + $0x1c0] sm:$0xff]
  %v77 = vld [vmem:[%s3 + $0x1c8] sm:$0xff]
  %v78 = vld [vmem:[%s3 + $0x1d0] sm:$0xff]
  %v79 = vld [vmem:[%s3 + $0x1d8] sm:$0xff]
  %v80 = vld [vmem:[%s3 + $0x1e0] sm:$0xff]
  %v81 = vld [vmem:[%s3 + $0x1e8] sm:$0xff]
  %v82 = vld [vmem:[%s3 + $0x1f0] sm:$0xff]
  %v83 = vld [vmem:[%s3 + $0x1f8] sm:$0xff]
  %v84 = vld [vmem:[%s3 + $0x200] sm:$0xff]
  %v85 = vld [vmem:[%s3 + $0x208] sm:$0xff]
  %v86 = vld [vmem:[%s3 + $0x210] sm:$0xff]
  %v87 = vld [vmem:[%s3 + $0x218] sm:$0xff]
  %v88 = vld [vmem:[%s4] sm:$0xff]
  %v89 = vld [vmem:[%s4 + $0x8] sm:$0xff]
  %v90 = vld [vmem:[%s1] sm:$0xff]
  %v91 = vld [vmem:[%s1 + $0x8] sm:$0xff]
  %v92 = vld [vmem:[%s1 + $0x10] sm:$0xff]
  %v93 = vld [vmem:[%s1 + $0x18] sm:$0xff]
  %v94 = vld [vmem:[%s1 + $0x20] sm:$0xff]
  %v95 = vld [vmem:[%s1 + $0x28] sm:$0xff]
  %v96 = vld [vmem:[%s0] sm:$0xff]
  %v97 = vld [vmem:[%s0 + $0x8] sm:$0xff]
  %v98 = vld [vmem:[%s0 + $0x10] sm:$0xff]
  %v99 = vld [vmem:[%s0 + $0x18] sm:$0xff]
  %v100 = vld [vmem:[%s0 + $0x20] sm:$0xff]
  %v101 = vld [vmem:[%s0 + $0x28] sm:$0xff]
  %v102 = vld [vmem:[%s0 + $0x30] sm:$0xff]
  %v103 = vld [vmem:[%s0 + $0x38] sm:$0xff]
  %v104 = vld [vmem:[%s0 + $0x40] sm:$0xff]
  %v105 = vld [vmem:[%s0 + $0x48] sm:$0xff]
  %v106 = vld [vmem:[%s0 + $0x50] sm:$0xff]
  %v107 = vld [vmem:[%s0 + $0x58] sm:$0xff]
  %v108 = vld [vmem:[%s0 + $0x60] sm:$0xff]
  %v109 = vld [vmem:[%s0 + $0x68] sm:$0xff]
  %v110 = vld [vmem:[%s0 + $0x70] sm:$0xff]
  %v111 = vld [vmem:[%s0 + $0x78] sm:$0xff]
  %v112 = vlaneseq
  %v113 = vshrl.u32 %v112, 7
  %v114 = vsub.s32 1, %v113
  %v115 = vrot.slane %v88, %v114
  %vm116 = vcmask 261120
  %v118 = vsel %vm116, %v96, 0
  %v121 = vsel %vm116, %v97, 0
  %v124 = vsel %vm116, %v98, 0
  %v127 = vsel %vm116, %v99, 0
  %v130 = vsel %vm116, %v100, 0
  %v133 = vsel %vm116, %v101, 0
  %v136 = vsel %vm116, %v102, 0
  %v139 = vsel %vm116, %v103, 0
  %v142 = vsel %vm116, %v104, 0
  %v145 = vsel %vm116, %v105, 0
  %v148 = vsel %vm116, %v106, 0
  %v151 = vsel %vm116, %v107, 0
  %v154 = vsel %vm116, %v108, 0
  %v157 = vsel %vm116, %v109, 0
  %v160 = vsel %vm116, %v110, 0
  %v163 = vsel %vm116, %v111, 0
  %165 = vmatprep.subr.mxu0 0.0
  %166 = vmatpush1.msra.mxu0 %v20
  %167 = vmatprep.subr.mxu0 0.0
  %168 = vmatpush1.msra.mxu0 %v21
  %169 = vmatprep.subr.mxu0 0.0
  %170 = vmatpush1.msra.mxu0 %v22
  %171 = vmatprep.subr.mxu0 0.0
  %172 = vmatpush1.msra.mxu0 %v23
  %173 = vmatprep.subr.mxu0 0.0
  %174 = vmatpush1.msra.mxu0 0.0
  %175 = vmatprep.subr.mxu0 0.0
  %176 = vmatpush1.msra.mxu0 0.0
  %177 = vmatprep.subr.mxu0 0.0
  %178 = vmatpush1.msra.mxu0 0.0
  %179 = vmatprep.subr.mxu0 0.0
  %180 = vmatpush1.msra.mxu0 0.0
  %181 = vmatprep.subr.mxu0 0.0
  %182 = vmatpush1.msra.mxu0 0.0
  %183 = vmatprep.subr.mxu0 0.0
  %184 = vmatpush1.msra.mxu0 0.0
  %185 = vmatprep.subr.mxu0 0.0
  %186 = vmatpush1.msra.mxu0 0.0
  %187 = vmatprep.subr.mxu0 0.0
  %188 = vmatpush1.msra.mxu0 0.0
  %189 = vmatprep.subr.mxu0 0.0
  %190 = vmatpush1.msra.mxu0 0.0
  %191 = vmatprep.subr.mxu0 0.0
  %192 = vmatpush1.msra.mxu0 0.0
  %193 = vmatprep.subr.mxu0 0.0
  %194 = vmatpush1.msra.mxu0 0.0
  %195 = vmatprep.subr.mxu0 0.0
  %196 = vmatpush1.msra.mxu0 0.0
  %197 = vmatprep.subr.mxu0 0.0
  %198 = vmatpush1.msra.mxu0 0.0
  %199 = vmatprep.subr.mxu0 0.0
  %200 = vmatpush1.msra.mxu0 0.0
  %201 = vmatprep.subr.mxu0 0.0
  %202 = vmatpush1.msra.mxu0 0.0
  %203 = vmatprep.subr.mxu0 0.0
  %204 = vmatpush1.msra.mxu0 0.0
  %205 = vmatprep.subr.mxu0 0.0
  %206 = vmatpush1.msra.mxu0 0.0
  %207 = vmatprep.subr.mxu0 0.0
  %208 = vmatpush1.msra.mxu0 0.0
  %209 = vmatprep.subr.mxu0 0.0
  %210 = vmatpush1.msra.mxu0 0.0
  %211 = vmatprep.subr.mxu0 0.0
  %212 = vmatpush1.msra.mxu0 0.0
  %213 = vmatprep.subr.mxu0 0.0
  %214 = vmatpush1.msra.mxu0 0.0
  %215 = vmatprep.subr.mxu0 0.0
  %216 = vmatpush1.msra.mxu0 0.0
  %217 = vmatprep.subr.mxu0 0.0
  %218 = vmatpush1.msra.mxu0 0.0
  %219 = vmatprep.subr.mxu0 0.0
  %220 = vmatpush1.msra.mxu0 0.0
  %221 = vmatprep.subr.mxu0 0.0
  %222 = vmatpush1.msra.mxu0 0.0
  %223 = vmatprep.subr.mxu0 0.0
  %224 = vmatpush1.msra.mxu0 0.0
  %225 = vmatprep.subr.mxu0 0.0
  %226 = vmatpush1.msra.mxu0 0.0
  %227 = vmatprep.subr.mxu0 0.0
  %228 = vmatpush1.msra.mxu0 0.0
  %229 = vmatprep.mubr.f32.mxu0 0.0
  %230 = vmatmul.mubr.f32.gmra.mrb[0].mxu0 %v118
  %v231 = vpop.f32.mrb[0].mxu0
  %v232 = vadd.f32 %v115, %v231
  %v233 = vpop.f32.mrb[0].mxu0
  %234 = vmatprep.mubr.f32.mxu0 0.0
  %235 = vmatmul.mubr.f32.gmra.mrb[0].mxu0 %v121
  %v236 = vpop.f32.mrb[0].mxu0
  %v237 = vadd.f32 %v115, %v236
  %v238 = vpop.f32.mrb[0].mxu0
  %239 = vmatprep.mubr.f32.mxu0 0.0
  %240 = vmatmul.mubr.f32.gmra.mrb[0].mxu0 %v124
  %v241 = vpop.f32.mrb[0].mxu0
  %v242 = vadd.f32 %v115, %v241
  %v243 = vpop.f32.mrb[0].mxu0
  %244 = vmatprep.mubr.f32.mxu0 0.0
  %245 = vmatmul.mubr.f32.gmra.mrb[0].mxu0 %v127
  %v246 = vpop.f32.mrb[0].mxu0
  %v247 = vadd.f32 %v115, %v246
  %v248 = vpop.f32.mrb[0].mxu0
  %249 = vmatprep.mubr.f32.mxu0 0.0
  %250 = vmatmul.mubr.f32.gmra.mrb[0].mxu0 %v130
  %v251 = vpop.f32.mrb[0].mxu0
  %v252 = vadd.f32 %v115, %v251
  %v253 = vpop.f32.mrb[0].mxu0
  %254 = vmatprep.mubr.f32.mxu0 0.0
  %255 = vmatmul.mubr.f32.gmra.mrb[0].mxu0 %v133
  %v256 = vpop.f32.mrb[0].mxu0
  %v257 = vadd.f32 %v115, %v256
  %v258 = vpop.f32.mrb[0].mxu0
  %259 = vmatprep.mubr.f32.mxu0 0.0
  %260 = vmatmul.mubr.f32.gmra.mrb[0].mxu0 %v136
  %v261 = vpop.f32.mrb[0].mxu0
  %v262 = vadd.f32 %v115, %v261
  %v263 = vpop.f32.mrb[0].mxu0
  %264 = vmatprep.mubr.f32.mxu0 0.0
  %265 = vmatmul.mubr.f32.gmra.mrb[0].mxu0 %v139
  %v266 = vpop.f32.mrb[0].mxu0
  %v267 = vadd.f32 %v115, %v266
  %v268 = vpop.f32.mrb[0].mxu0
  %269 = vmatprep.mubr.f32.mxu0 0.0
  %270 = vmatmul.mubr.f32.gmra.mrb[0].mxu0 %v142
  %v271 = vpop.f32.mrb[0].mxu0
  %v272 = vadd.f32 %v115, %v271
  %v273 = vpop.f32.mrb[0].mxu0
  %274 = vmatprep.mubr.f32.mxu0 0.0
  %275 = vmatmul.mubr.f32.gmra.mrb[0].mxu0 %v145
  %v276 = vpop.f32.mrb[0].mxu0
  %v277 = vadd.f32 %v115, %v276
  %v278 = vpop.f32.mrb[0].mxu0
  %279 = vmatprep.mubr.f32.mxu0 0.0
  %280 = vmatmul.mubr.f32.gmra.mrb[0].mxu0 %v148
  %v281 = vpop.f32.mrb[0].mxu0
  %v282 = vadd.f32 %v115, %v281
  %v283 = vpop.f32.mrb[0].mxu0
  %284 = vmatprep.mubr.f32.mxu0 0.0
  %285 = vmatmul.mubr.f32.gmra.mrb[0].mxu0 %v151
  %v286 = vpop.f32.mrb[0].mxu0
  %v287 = vadd.f32 %v115, %v286
  %v288 = vpop.f32.mrb[0].mxu0
  %289 = vmatprep.mubr.f32.mxu0 0.0
  %290 = vmatmul.mubr.f32.gmra.mrb[0].mxu0 %v154
  %v291 = vpop.f32.mrb[0].mxu0
  %v292 = vadd.f32 %v115, %v291
  %v293 = vpop.f32.mrb[0].mxu0
  %294 = vmatprep.mubr.f32.mxu0 0.0
  %295 = vmatmul.mubr.f32.gmra.mrb[0].mxu0 %v157
  %v296 = vpop.f32.mrb[0].mxu0
  %v297 = vadd.f32 %v115, %v296
  %v298 = vpop.f32.mrb[0].mxu0
  %299 = vmatprep.mubr.f32.mxu0 0.0
  %300 = vmatmul.mubr.f32.gmra.mrb[0].mxu0 %v160
  %v301 = vpop.f32.mrb[0].mxu0
  %v302 = vadd.f32 %v115, %v301
  %v303 = vpop.f32.mrb[0].mxu0
  %304 = vmatprep.mubr.f32.mxu0 0.0
  %305 = vmatmul.mubr.f32.gmra.mrb[0].mxu0 %v163
  %v306 = vpop.f32.mrb[0].mxu0
  %v307 = vadd.f32 %v115, %v306
  %v308 = vpop.f32.mrb[0].mxu0
  %309 = vdwg.mxu0
  %v310 = vmax.f32 %v232, 0.0
  %v311 = vmax.f32 %v237, 0.0
  %v312 = vmax.f32 %v242, 0.0
  %v313 = vmax.f32 %v247, 0.0
  %v314 = vmax.f32 %v252, 0.0
  %v315 = vmax.f32 %v257, 0.0
  %v316 = vmax.f32 %v262, 0.0
  %v317 = vmax.f32 %v267, 0.0
  %v318 = vmax.f32 %v272, 0.0
  %v319 = vmax.f32 %v277, 0.0
  %v320 = vmax.f32 %v282, 0.0
  %v321 = vmax.f32 %v287, 0.0
  %v322 = vmax.f32 %v292, 0.0
  %v323 = vmax.f32 %v297, 0.0
  %v324 = vmax.f32 %v302, 0.0
  %v325 = vmax.f32 %v307, 0.0
  %v326 = vlaneseq
  %v327 = vshrl.u32 %v326, 7
  %v328 = vsub.s32 2, %v327
  %v329 = vrot.slane %v88, %v328
  %v331 = vsel %vm116, %v310, 0
  %v334 = vsel %vm116, %v311, 0
  %v337 = vsel %vm116, %v312, 0
  %v340 = vsel %vm116, %v313, 0
  %v343 = vsel %vm116, %v314, 0
  %v346 = vsel %vm116, %v315, 0
  %v349 = vsel %vm116, %v316, 0
  %v352 = vsel %vm116, %v317, 0
  %v355 = vsel %vm116, %v318, 0
  %v358 = vsel %vm116, %v319, 0
  %v361 = vsel %vm116, %v320, 0
  %v364 = vsel %vm116, %v321, 0
  %v367 = vsel %vm116, %v322, 0
  %v370 = vsel %vm116, %v323, 0
  %v373 = vsel %vm116, %v324, 0
  %v376 = vsel %vm116, %v325, 0
  %378 = vmatprep.subr.mxu0 0.0
  %379 = vmatpush1.msra.mxu0 %v24
  %380 = vmatprep.subr.mxu0 0.0
  %381 = vmatpush1.msra.mxu0 %v25
  %382 = vmatprep.subr.mxu0 0.0
  %383 = vmatpush1.msra.mxu0 %v26
  %384 = vmatprep.subr.mxu0 0.0
  %385 = vmatpush1.msra.mxu0 %v27
  %386 = vmatprep.subr.mxu0 0.0
  %387 = vmatpush1.msra.mxu0 0.0
  %388 = vmatprep.subr.mxu0 0.0
  %389 = vmatpush1.msra.mxu0 0.0
  %390 = vmatprep.subr.mxu0 0.0
  %391 = vmatpush1.msra.mxu0 0.0
  %392 = vmatprep.subr.mxu0 0.0
  %393 = vmatpush1.msra.mxu0 0.0
  %394 = vmatprep.subr.mxu0 0.0
  %395 = vmatpush1.msra.mxu0 0.0
  %396 = vmatprep.subr.mxu0 0.0
  %397 = vmatpush1.msra.mxu0 0.0
  %398 = vmatprep.subr.mxu0 0.0
  %399 = vmatpush1.msra.mxu0 0.0
  %400 = vmatprep.subr.mxu0 0.0
  %401 = vmatpush1.msra.mxu0 0.0
  %402 = vmatprep.subr.mxu0 0.0
  %403 = vmatpush1.msra.mxu0 0.0
  %404 = vmatprep.subr.mxu0 0.0
  %405 = vmatpush1.msra.mxu0 0.0
  %406 = vmatprep.subr.mxu0 0.0
  %407 = vmatpush1.msra.mxu0 0.0
  %408 = vmatprep.subr.mxu0 0.0
  %409 = vmatpush1.msra.mxu0 0.0
  %410 = vmatprep.subr.mxu0 0.0
  %411 = vmatpush1.msra.mxu0 0.0
  %412 = vmatprep.subr.mxu0 0.0
  %413 = vmatpush1.msra.mxu0 0.0
  %414 = vmatprep.subr.mxu0 0.0
  %415 = vmatpush1.msra.mxu0 0.0
  %416 = vmatprep.subr.mxu0 0.0
  %417 = vmatpush1.msra.mxu0 0.0
  %418 = vmatprep.subr.mxu0 0.0
  %419 = vmatpush1.msra.mxu0 0.0
  %420 = vmatprep.subr.mxu0 0.0
  %421 = vmatpush1.msra.mxu0 0.0
  %422 = vmatprep.subr.mxu0 0.0
  %423 = vmatpush1.msra.mxu0 0.0
  %424 = vmatprep.subr.mxu0 0.0
  %425 = vmatpush1.msra.mxu0 0.0
  %426 = vmatprep.subr.mxu0 0.0
  %427 = vmatpush1.msra.mxu0 0.0
  %428 = vmatprep.subr.mxu0 0.0
  %429 = vmatpush1.msra.mxu0 0.0
  %430 = vmatprep.subr.mxu0 0.0
  %431 = vmatpush1.msra.mxu0 0.0
  %432 = vmatprep.subr.mxu0 0.0
  %433 = vmatpush1.msra.mxu0 0.0
  %434 = vmatprep.subr.mxu0 0.0
  %435 = vmatpush1.msra.mxu0 0.0
  %436 = vmatprep.subr.mxu0 0.0
  %437 = vmatpush1.msra.mxu0 0.0
  %438 = vmatprep.subr.mxu0 0.0
  %439 = vmatpush1.msra.mxu0 0.0
  %440 = vmatprep.subr.mxu0 0.0
  %441 = vmatpush1.msra.mxu0 0.0
  %442 = vmatprep.mubr.f32.mxu0 0.0
  %443 = vmatmul.mubr.f32.gmra.mrb[0].mxu0 %v331
  %v444 = vpop.f32.mrb[0].mxu0
  %v445 = vadd.f32 %v329, %v444
  %v446 = vpop.f32.mrb[0].mxu0
  %447 = vmatprep.mubr.f32.mxu0 0.0
  %448 = vmatmul.mubr.f32.gmra.mrb[0].mxu0 %v334
  %v449 = vpop.f32.mrb[0].mxu0
  %v450 = vadd.f32 %v329, %v449
  %v451 = vpop.f32.mrb[0].mxu0
  %452 = vmatprep.mubr.f32.mxu0 0.0
  %453 = vmatmul.mubr.f32.gmra.mrb[0].mxu0 %v337
  %v454 = vpop.f32.mrb[0].mxu0
  %v455 = vadd.f32 %v329, %v454
  %v456 = vpop.f32.mrb[0].mxu0
  %457 = vmatprep.mubr.f32.mxu0 0.0
  %458 = vmatmul.mubr.f32.gmra.mrb[0].mxu0 %v340
  %v459 = vpop.f32.mrb[0].mxu0
  %v460 = vadd.f32 %v329, %v459
  %v461 = vpop.f32.mrb[0].mxu0
  %462 = vmatprep.mubr.f32.mxu0 0.0
  %463 = vmatmul.mubr.f32.gmra.mrb[0].mxu0 %v343
  %v464 = vpop.f32.mrb[0].mxu0
  %v465 = vadd.f32 %v329, %v464
  %v466 = vpop.f32.mrb[0].mxu0
  %467 = vmatprep.mubr.f32.mxu0 0.0
  %468 = vmatmul.mubr.f32.gmra.mrb[0].mxu0 %v346
  %v469 = vpop.f32.mrb[0].mxu0
  %v470 = vadd.f32 %v329, %v469
  %v471 = vpop.f32.mrb[0].mxu0
  %472 = vmatprep.mubr.f32.mxu0 0.0
  %473 = vmatmul.mubr.f32.gmra.mrb[0].mxu0 %v349
  %v474 = vpop.f32.mrb[0].mxu0
  %v475 = vadd.f32 %v329, %v474
  %v476 = vpop.f32.mrb[0].mxu0
  %477 = vmatprep.mubr.f32.mxu0 0.0
  %478 = vmatmul.mubr.f32.gmra.mrb[0].mxu0 %v352
  %v479 = vpop.f32.mrb[0].mxu0
  %v480 = vadd.f32 %v329, %v479
  %v481 = vpop.f32.mrb[0].mxu0
  %482 = vmatprep.mubr.f32.mxu0 0.0
  %483 = vmatmul.mubr.f32.gmra.mrb[0].mxu0 %v355
  %v484 = vpop.f32.mrb[0].mxu0
  %v485 = vadd.f32 %v329, %v484
  %v486 = vpop.f32.mrb[0].mxu0
  %487 = vmatprep.mubr.f32.mxu0 0.0
  %488 = vmatmul.mubr.f32.gmra.mrb[0].mxu0 %v358
  %v489 = vpop.f32.mrb[0].mxu0
  %v490 = vadd.f32 %v329, %v489
  %v491 = vpop.f32.mrb[0].mxu0
  %492 = vmatprep.mubr.f32.mxu0 0.0
  %493 = vmatmul.mubr.f32.gmra.mrb[0].mxu0 %v361
  %v494 = vpop.f32.mrb[0].mxu0
  %v495 = vadd.f32 %v329, %v494
  %v496 = vpop.f32.mrb[0].mxu0
  %497 = vmatprep.mubr.f32.mxu0 0.0
  %498 = vmatmul.mubr.f32.gmra.mrb[0].mxu0 %v364
  %v499 = vpop.f32.mrb[0].mxu0
  %v500 = vadd.f32 %v329, %v499
  %v501 = vpop.f32.mrb[0].mxu0
  %502 = vmatprep.mubr.f32.mxu0 0.0
  %503 = vmatmul.mubr.f32.gmra.mrb[0].mxu0 %v367
  %v504 = vpop.f32.mrb[0].mxu0
  %v505 = vadd.f32 %v329, %v504
  %v506 = vpop.f32.mrb[0].mxu0
  %507 = vmatprep.mubr.f32.mxu0 0.0
  %508 = vmatmul.mubr.f32.gmra.mrb[0].mxu0 %v370
  %v509 = vpop.f32.mrb[0].mxu0
  %v510 = vadd.f32 %v329, %v509
  %v511 = vpop.f32.mrb[0].mxu0
  %512 = vmatprep.mubr.f32.mxu0 0.0
  %513 = vmatmul.mubr.f32.gmra.mrb[0].mxu0 %v373
  %v514 = vpop.f32.mrb[0].mxu0
  %v515 = vadd.f32 %v329, %v514
  %v516 = vpop.f32.mrb[0].mxu0
  %517 = vmatprep.mubr.f32.mxu0 0.0
  %518 = vmatmul.mubr.f32.gmra.mrb[0].mxu0 %v376
  %v519 = vpop.f32.mrb[0].mxu0
  %v520 = vadd.f32 %v329, %v519
  %v521 = vpop.f32.mrb[0].mxu0
  %522 = vdwg.mxu0
  %v523 = vmax.f32 %v445, 0.0
  %v524 = vmax.f32 %v450, 0.0
  %v525 = vmax.f32 %v455, 0.0
  %v526 = vmax.f32 %v460, 0.0
  %v527 = vmax.f32 %v465, 0.0
  %v528 = vmax.f32 %v470, 0.0
  %v529 = vmax.f32 %v475, 0.0
  %v530 = vmax.f32 %v480, 0.0
  %v531 = vmax.f32 %v485, 0.0
  %v532 = vmax.f32 %v490, 0.0
  %v533 = vmax.f32 %v495, 0.0
  %v534 = vmax.f32 %v500, 0.0
  %v535 = vmax.f32 %v505, 0.0
  %v536 = vmax.f32 %v510, 0.0
  %v537 = vmax.f32 %v515, 0.0
  %v538 = vmax.f32 %v520, 0.0
  %v539 = vlaneseq
  %v540 = vshrl.u32 %v539, 7
  %v541 = vsub.s32 3, %v540
  %v542 = vrot.slane %v88, %v541
  %v544 = vsel %vm116, %v523, 0
  %v547 = vsel %vm116, %v524, 0
  %v550 = vsel %vm116, %v525, 0
  %v553 = vsel %vm116, %v526, 0
  %v556 = vsel %vm116, %v527, 0
  %v559 = vsel %vm116, %v528, 0
  %v562 = vsel %vm116, %v529, 0
  %v565 = vsel %vm116, %v530, 0
  %v568 = vsel %vm116, %v531, 0
  %v571 = vsel %vm116, %v532, 0
  %v574 = vsel %vm116, %v533, 0
  %v577 = vsel %vm116, %v534, 0
  %v580 = vsel %vm116, %v535, 0
  %v583 = vsel %vm116, %v536, 0
  %v586 = vsel %vm116, %v537, 0
  %v589 = vsel %vm116, %v538, 0
  %591 = vmatprep.subr.mxu0 0.0
  %592 = vmatpush1.msra.mxu0 %v28
  %593 = vmatprep.subr.mxu0 0.0
  %594 = vmatpush1.msra.mxu0 %v29
  %595 = vmatprep.subr.mxu0 0.0
  %596 = vmatpush1.msra.mxu0 %v30
  %597 = vmatprep.subr.mxu0 0.0
  %598 = vmatpush1.msra.mxu0 %v31
  %599 = vmatprep.subr.mxu0 0.0
  %600 = vmatpush1.msra.mxu0 0.0
  %601 = vmatprep.subr.mxu0 0.0
  %602 = vmatpush1.msra.mxu0 0.0
  %603 = vmatprep.subr.mxu0 0.0
  %604 = vmatpush1.msra.mxu0 0.0
  %605 = vmatprep.subr.mxu0 0.0
  %606 = vmatpush1.msra.mxu0 0.0
  %607 = vmatprep.subr.mxu0 0.0
  %608 = vmatpush1.msra.mxu0 0.0
  %609 = vmatprep.subr.mxu0 0.0
  %610 = vmatpush1.msra.mxu0 0.0
  %611 = vmatprep.subr.mxu0 0.0
  %612 = vmatpush1.msra.mxu0 0.0
  %613 = vmatprep.subr.mxu0 0.0
  %614 = vmatpush1.msra.mxu0 0.0
  %615 = vmatprep.subr.mxu0 0.0
  %616 = vmatpush1.msra.mxu0 0.0
  %617 = vmatprep.subr.mxu0 0.0
  %618 = vmatpush1.msra.mxu0 0.0
  %619 = vmatprep.subr.mxu0 0.0
  %620 = vmatpush1.msra.mxu0 0.0
  %621 = vmatprep.subr.mxu0 0.0
  %622 = vmatpush1.msra.mxu0 0.0
  %623 = vmatprep.subr.mxu0 0.0
  %624 = vmatpush1.msra.mxu0 0.0
  %625 = vmatprep.subr.mxu0 0.0
  %626 = vmatpush1.msra.mxu0 0.0
  %627 = vmatprep.subr.mxu0 0.0
  %628 = vmatpush1.msra.mxu0 0.0
  %629 = vmatprep.subr.mxu0 0.0
  %630 = vmatpush1.msra.mxu0 0.0
  %631 = vmatprep.subr.mxu0 0.0
  %632 = vmatpush1.msra.mxu0 0.0
  %633 = vmatprep.subr.mxu0 0.0
  %634 = vmatpush1.msra.mxu0 0.0
  %635 = vmatprep.subr.mxu0 0.0
  %636 = vmatpush1.msra.mxu0 0.0
  %637 = vmatprep.subr.mxu0 0.0
  %638 = vmatpush1.msra.mxu0 0.0
  %639 = vmatprep.subr.mxu0 0.0
  %640 = vmatpush1.msra.mxu0 0.0
  %641 = vmatprep.subr.mxu0 0.0
  %642 = vmatpush1.msra.mxu0 0.0
  %643 = vmatprep.subr.mxu0 0.0
  %644 = vmatpush1.msra.mxu0 0.0
  %645 = vmatprep.subr.mxu0 0.0
  %646 = vmatpush1.msra.mxu0 0.0
  %647 = vmatprep.subr.mxu0 0.0
  %648 = vmatpush1.msra.mxu0 0.0
  %649 = vmatprep.subr.mxu0 0.0
  %650 = vmatpush1.msra.mxu0 0.0
  %651 = vmatprep.subr.mxu0 0.0
  %652 = vmatpush1.msra.mxu0 0.0
  %653 = vmatprep.subr.mxu0 0.0
  %654 = vmatpush1.msra.mxu0 0.0
  %655 = vmatprep.mubr.f32.mxu0 0.0
  %656 = vmatmul.mubr.f32.gmra.mrb[0].mxu0 %v544
  %v657 = vpop.f32.mrb[0].mxu0
  %v658 = vadd.f32 %v542, %v657
  %v659 = vpop.f32.mrb[0].mxu0
  %660 = vmatprep.mubr.f32.mxu0 0.0
  %661 = vmatmul.mubr.f32.gmra.mrb[0].mxu0 %v547
  %v662 = vpop.f32.mrb[0].mxu0
  %v663 = vadd.f32 %v542, %v662
  %v664 = vpop.f32.mrb[0].mxu0
  %665 = vmatprep.mubr.f32.mxu0 0.0
  %666 = vmatmul.mubr.f32.gmra.mrb[0].mxu0 %v550
  %v667 = vpop.f32.mrb[0].mxu0
  %v668 = vadd.f32 %v542, %v667
  %v669 = vpop.f32.mrb[0].mxu0
  %670 = vmatprep.mubr.f32.mxu0 0.0
  %671 = vmatmul.mubr.f32.gmra.mrb[0].mxu0 %v553
  %v672 = vpop.f32.mrb[0].mxu0
  %v673 = vadd.f32 %v542, %v672
  %v674 = vpop.f32.mrb[0].mxu0
  %675 = vmatprep.mubr.f32.mxu0 0.0
  %676 = vmatmul.mubr.f32.gmra.mrb[0].mxu0 %v556
  %v677 = vpop.f32.mrb[0].mxu0
  %v678 = vadd.f32 %v542, %v677
  %v679 = vpop.f32.mrb[0].mxu0
  %680 = vmatprep.mubr.f32.mxu0 0.0
  %681 = vmatmul.mubr.f32.gmra.mrb[0].mxu0 %v559
  %v682 = vpop.f32.mrb[0].mxu0
  %v683 = vadd.f32 %v542, %v682
  %v684 = vpop.f32.mrb[0].mxu0
  %685 = vmatprep.mubr.f32.mxu0 0.0
  %686 = vmatmul.mubr.f32.gmra.mrb[0].mxu0 %v562
  %v687 = vpop.f32.mrb[0].mxu0
  %v688 = vadd.f32 %v542, %v687
  %v689 = vpop.f32.mrb[0].mxu0
  %690 = vmatprep.mubr.f32.mxu0 0.0
  %691 = vmatmul.mubr.f32.gmra.mrb[0].mxu0 %v565
  %v692 = vpop.f32.mrb[0].mxu0
  %v693 = vadd.f32 %v542, %v692
  %v694 = vpop.f32.mrb[0].mxu0
  %695 = vmatprep.mubr.f32.mxu0 0.0
  %696 = vmatmul.mubr.f32.gmra.mrb[0].mxu0 %v568
  %v697 = vpop.f32.mrb[0].mxu0
  %v698 = vadd.f32 %v542, %v697
  %v699 = vpop.f32.mrb[0].mxu0
  %700 = vmatprep.mubr.f32.mxu0 0.0
  %701 = vmatmul.mubr.f32.gmra.mrb[0].mxu0 %v571
  %v702 = vpop.f32.mrb[0].mxu0
  %v703 = vadd.f32 %v542, %v702
  %v704 = vpop.f32.mrb[0].mxu0
  %705 = vmatprep.mubr.f32.mxu0 0.0
  %706 = vmatmul.mubr.f32.gmra.mrb[0].mxu0 %v574
  %v707 = vpop.f32.mrb[0].mxu0
  %v708 = vadd.f32 %v542, %v707
  %v709 = vpop.f32.mrb[0].mxu0
  %710 = vmatprep.mubr.f32.mxu0 0.0
  %711 = vmatmul.mubr.f32.gmra.mrb[0].mxu0 %v577
  %v712 = vpop.f32.mrb[0].mxu0
  %v713 = vadd.f32 %v542, %v712
  %v714 = vpop.f32.mrb[0].mxu0
  %715 = vmatprep.mubr.f32.mxu0 0.0
  %716 = vmatmul.mubr.f32.gmra.mrb[0].mxu0 %v580
  %v717 = vpop.f32.mrb[0].mxu0
  %v718 = vadd.f32 %v542, %v717
  %v719 = vpop.f32.mrb[0].mxu0
  %720 = vmatprep.mubr.f32.mxu0 0.0
  %721 = vmatmul.mubr.f32.gmra.mrb[0].mxu0 %v583
  %v722 = vpop.f32.mrb[0].mxu0
  %v723 = vadd.f32 %v542, %v722
  %v724 = vpop.f32.mrb[0].mxu0
  %725 = vmatprep.mubr.f32.mxu0 0.0
  %726 = vmatmul.mubr.f32.gmra.mrb[0].mxu0 %v586
  %v727 = vpop.f32.mrb[0].mxu0
  %v728 = vadd.f32 %v542, %v727
  %v729 = vpop.f32.mrb[0].mxu0
  %730 = vmatprep.mubr.f32.mxu0 0.0
  %731 = vmatmul.mubr.f32.gmra.mrb[0].mxu0 %v589
  %v732 = vpop.f32.mrb[0].mxu0
  %v733 = vadd.f32 %v542, %v732
  %v734 = vpop.f32.mrb[0].mxu0
  %735 = vdwg.mxu0
  %v736 = vmax.f32 %v658, 0.0
  %v737 = vmax.f32 %v663, 0.0
  %v738 = vmax.f32 %v668, 0.0
  %v739 = vmax.f32 %v673, 0.0
  %v740 = vmax.f32 %v678, 0.0
  %v741 = vmax.f32 %v683, 0.0
  %v742 = vmax.f32 %v688, 0.0
  %v743 = vmax.f32 %v693, 0.0
  %v744 = vmax.f32 %v698, 0.0
  %v745 = vmax.f32 %v703, 0.0
  %v746 = vmax.f32 %v708, 0.0
  %v747 = vmax.f32 %v713, 0.0
  %v748 = vmax.f32 %v718, 0.0
  %v749 = vmax.f32 %v723, 0.0
  %v750 = vmax.f32 %v728, 0.0
  %v751 = vmax.f32 %v733, 0.0
  %v752 = vlaneseq
  %v753 = vshrl.u32 %v752, 7
  %v754 = vsub.s32 0, %v753
  %v755 = vrot.slane %v88, %v754
  %v756 = vmul.f32 %v736, %v755
  %v757 = vmul.f32 %v737, %v755
  %v758 = vmul.f32 %v738, %v755
  %v759 = vmul.f32 %v739, %v755
  %v760 = vmul.f32 %v740, %v755
  %v761 = vmul.f32 %v741, %v755
  %v762 = vmul.f32 %v742, %v755
  %v763 = vmul.f32 %v743, %v755
  %v764 = vmul.f32 %v744, %v755
  %v765 = vmul.f32 %v745, %v755
  %v766 = vmul.f32 %v746, %v755
  %v767 = vmul.f32 %v747, %v755
  %v768 = vmul.f32 %v748, %v755
  %v769 = vmul.f32 %v749, %v755
  %v770 = vmul.f32 %v750, %v755
  %v771 = vmul.f32 %v751, %v755
  %v772 = vsel %vm116, %v756, 0.0
  %773 = vadd.xlane.f32.xlu0 %v772
  %v774 = vpop.xlane.xlu0 %773
  %v775 = vsel %vm116, %v757, 0.0
  %776 = vadd.xlane.f32.xlu0 %v775
  %v777 = vpop.xlane.xlu0 %776
  %v778 = vsel %vm116, %v758, 0.0
  %779 = vadd.xlane.f32.xlu0 %v778
  %v780 = vpop.xlane.xlu0 %779
  %v781 = vsel %vm116, %v759, 0.0
  %782 = vadd.xlane.f32.xlu0 %v781
  %v783 = vpop.xlane.xlu0 %782
  %v784 = vsel %vm116, %v760, 0.0
  %785 = vadd.xlane.f32.xlu0 %v784
  %v786 = vpop.xlane.xlu0 %785
  %v787 = vsel %vm116, %v761, 0.0
  %788 = vadd.xlane.f32.xlu0 %v787
  %v789 = vpop.xlane.xlu0 %788
  %v790 = vsel %vm116, %v762, 0.0
  %791 = vadd.xlane.f32.xlu0 %v790
  %v792 = vpop.xlane.xlu0 %791
  %v793 = vsel %vm116, %v763, 0.0
  %794 = vadd.xlane.f32.xlu0 %v793
  %v795 = vpop.xlane.xlu0 %794
  %v796 = vsel %vm116, %v764, 0.0
  %797 = vadd.xlane.f32.xlu0 %v796
  %v798 = vpop.xlane.xlu0 %797
  %v799 = vsel %vm116, %v765, 0.0
  %800 = vadd.xlane.f32.xlu0 %v799
  %v801 = vpop.xlane.xlu0 %800
  %v802 = vsel %vm116, %v766, 0.0
  %803 = vadd.xlane.f32.xlu0 %v802
  %v804 = vpop.xlane.xlu0 %803
  %v805 = vsel %vm116, %v767, 0.0
  %806 = vadd.xlane.f32.xlu0 %v805
  %v807 = vpop.xlane.xlu0 %806
  %v808 = vsel %vm116, %v768, 0.0
  %809 = vadd.xlane.f32.xlu0 %v808
  %v810 = vpop.xlane.xlu0 %809
  %v811 = vsel %vm116, %v769, 0.0
  %812 = vadd.xlane.f32.xlu0 %v811
  %v813 = vpop.xlane.xlu0 %812
  %v814 = vsel %vm116, %v770, 0.0
  %815 = vadd.xlane.f32.xlu0 %v814
  %v816 = vpop.xlane.xlu0 %815
  %v817 = vsel %vm116, %v771, 0.0
  %818 = vadd.xlane.f32.xlu0 %v817
  %v819 = vpop.xlane.xlu0 %818
  %v820 = vlaneseq
  %v821 = vand.u32 %v820, 127
  %v822 = vld [vmem:[%s2] sm:$0xff]
  %v823 = vld [vmem:[%s2 + $0x8] sm:$0xff]
  %824 = vset.pattern.permute.xlu0 0
  %825 = vperm.xlu0 %824, %v822
  %v826 = vpop.permute.xlu0 %825
  %827 = vset.pattern.permute.xlu0 0
  %828 = vperm.xlu0 %827, %v823
  %v829 = vpop.permute.xlu0 %828
  %vm830 = vcmp.lt.s32.totalorder %v821, %v826
  %vm831 = vcmp.lt.s32.totalorder %v821, %v829
  %v848 = vlaneseq
  %v849 = vshrl.u32 %v848, 7
  %v850 = vsub.s32 %v821, %v849
  %v851 = vrot.slane %v774, %v850
  %v852 = vlaneseq
  %v853 = vshrl.u32 %v852, 7
  %v854 = vsub.s32 %v821, %v853
  %v855 = vrot.slane %v777, %v854
  %v856 = vlaneseq
  %v857 = vshrl.u32 %v856, 7
  %v858 = vsub.s32 %v821, %v857
  %v859 = vrot.slane %v780, %v858
  %v860 = vlaneseq
  %v861 = vshrl.u32 %v860, 7
  %v862 = vsub.s32 %v821, %v861
  %v863 = vrot.slane %v783, %v862
  %v864 = vlaneseq
  %v865 = vshrl.u32 %v864, 7
  %v866 = vsub.s32 %v821, %v865
  %v867 = vrot.slane %v786, %v866
  %v868 = vlaneseq
  %v869 = vshrl.u32 %v868, 7
  %v870 = vsub.s32 %v821, %v869
  %v871 = vrot.slane %v789, %v870
  %v872 = vlaneseq
  %v873 = vshrl.u32 %v872, 7
  %v874 = vsub.s32 %v821, %v873
  %v875 = vrot.slane %v792, %v874
  %v876 = vlaneseq
  %v877 = vshrl.u32 %v876, 7
  %v878 = vsub.s32 %v821, %v877
  %v879 = vrot.slane %v795, %v878
  %v880 = vlaneseq
  %v881 = vshrl.u32 %v880, 7
  %v882 = vsub.s32 %v821, %v881
  %v883 = vrot.slane %v798, %v882
  %v884 = vlaneseq
  %v885 = vshrl.u32 %v884, 7
  %v886 = vsub.s32 %v821, %v885
  %v887 = vrot.slane %v801, %v886
  %v888 = vlaneseq
  %v889 = vshrl.u32 %v888, 7
  %v890 = vsub.s32 %v821, %v889
  %v891 = vrot.slane %v804, %v890
  %v892 = vlaneseq
  %v893 = vshrl.u32 %v892, 7
  %v894 = vsub.s32 %v821, %v893
  %v895 = vrot.slane %v807, %v894
  %v896 = vlaneseq
  %v897 = vshrl.u32 %v896, 7
  %v898 = vsub.s32 %v821, %v897
  %v899 = vrot.slane %v810, %v898
  %v900 = vlaneseq
  %v901 = vshrl.u32 %v900, 7
  %v902 = vsub.s32 %v821, %v901
  %v903 = vrot.slane %v813, %v902
  %v904 = vlaneseq
  %v905 = vshrl.u32 %v904, 7
  %v906 = vsub.s32 %v821, %v905
  %v907 = vrot.slane %v816, %v906
  %v908 = vlaneseq
  %v909 = vshrl.u32 %v908, 7
  %v910 = vsub.s32 %v821, %v909
  %v911 = vrot.slane %v819, %v910
  %vm912 = vcmask 1041409
  %v913 = vsel %vm912, %v855, %v851
  %vm914 = vcmask 1042434
  %v915 = vsel %vm914, %v859, %v913
  %vm916 = vcmask 1043459
  %v917 = vsel %vm916, %v863, %v915
  %vm918 = vcmask 1044484
  %v919 = vsel %vm918, %v867, %v917
  %vm920 = vcmask 1045509
  %v921 = vsel %vm920, %v871, %v919
  %vm922 = vcmask 1046534
  %v923 = vsel %vm922, %v875, %v921
  %vm924 = vcmask 1047559
  %v925 = vsel %vm924, %v879, %v923
  %v926 = vsel %vm912, %v887, %v883
  %v927 = vsel %vm914, %v891, %v926
  %v928 = vsel %vm916, %v895, %v927
  %v929 = vsel %vm918, %v899, %v928
  %v930 = vsel %vm920, %v903, %v929
  %v931 = vsel %vm922, %v907, %v930
  %v932 = vsel %vm924, %v911, %v931
  %v935 = vsel %vm830, %v925, -1e+30
  %v936 = vsel %vm831, %v932, -1e+30
  %vm937 = vcmask 64512
  %v938 = vsel %vm937, %v935, -inf
  %939 = vmax.xlane.f32.xlu0 %v938
  %v940 = vpop.xlane.xlu0 %939
  %v941 = vsel %vm937, %v936, -inf
  %942 = vmax.xlane.f32.xlu0 %v941
  %v943 = vpop.xlane.xlu0 %942
  %v944 = vsub.f32 %v935, %v940
  %v945 = vsub.f32 %v936, %v943
  %v946 = vmul.f32 %v944, 1.442695
  %v947 = vpow.pop %v946
  %v948 = vmul.f32 %v945, 1.442695
  %v949 = vpow.pop %v948
  %v950 = vsel %vm937, %v947, 0.0
  %951 = vadd.xlane.f32.xlu0 %v950
  %v952 = vpop.xlane.xlu0 %951
  %v953 = vsel %vm937, %v949, 0.0
  %954 = vadd.xlane.f32.xlu0 %v953
  %v955 = vpop.xlane.xlu0 %954
  %v956 = vrcp.pop %v952
  %v957 = vrcp.pop %v955
  %v958 = vmul.f32 %v947, %v956
  %v959 = vmul.f32 %v949, %v957
  %v960 = vlaneseq
  %v961 = vshrl.u32 %v960, 7
  %v962 = vsub.s32 0, %v961
  %v963 = vrot.slane %v958, %v962
  %965 = vbcast.lane.b32.xlu0 %v963, 256
  %v966 = vpop.permute.xlu0 %965
  %v967 = vlaneseq
  %v968 = vshrl.u32 %v967, 7
  %v969 = vsub.s32 1, %v968
  %v970 = vrot.slane %v958, %v969
  %972 = vbcast.lane.b32.xlu0 %v970, 256
  %v973 = vpop.permute.xlu0 %972
  %v974 = vlaneseq
  %v975 = vshrl.u32 %v974, 7
  %v976 = vsub.s32 2, %v975
  %v977 = vrot.slane %v958, %v976
  %979 = vbcast.lane.b32.xlu0 %v977, 256
  %v980 = vpop.permute.xlu0 %979
  %v981 = vlaneseq
  %v982 = vshrl.u32 %v981, 7
  %v983 = vsub.s32 3, %v982
  %v984 = vrot.slane %v958, %v983
  %986 = vbcast.lane.b32.xlu0 %v984, 256
  %v987 = vpop.permute.xlu0 %986
  %v988 = vlaneseq
  %v989 = vshrl.u32 %v988, 7
  %v990 = vsub.s32 4, %v989
  %v991 = vrot.slane %v958, %v990
  %993 = vbcast.lane.b32.xlu0 %v991, 256
  %v994 = vpop.permute.xlu0 %993
  %v995 = vlaneseq
  %v996 = vshrl.u32 %v995, 7
  %v997 = vsub.s32 5, %v996
  %v998 = vrot.slane %v958, %v997
  %1000 = vbcast.lane.b32.xlu0 %v998, 256
  %v1001 = vpop.permute.xlu0 %1000
  %v1002 = vlaneseq
  %v1003 = vshrl.u32 %v1002, 7
  %v1004 = vsub.s32 6, %v1003
  %v1005 = vrot.slane %v958, %v1004
  %1007 = vbcast.lane.b32.xlu0 %v1005, 256
  %v1008 = vpop.permute.xlu0 %1007
  %v1009 = vlaneseq
  %v1010 = vshrl.u32 %v1009, 7
  %v1011 = vsub.s32 7, %v1010
  %v1012 = vrot.slane %v958, %v1011
  %1014 = vbcast.lane.b32.xlu0 %v1012, 256
  %v1015 = vpop.permute.xlu0 %1014
  %v1016 = vlaneseq
  %v1017 = vshrl.u32 %v1016, 7
  %v1018 = vsub.s32 0, %v1017
  %v1019 = vrot.slane %v959, %v1018
  %1021 = vbcast.lane.b32.xlu0 %v1019, 256
  %v1022 = vpop.permute.xlu0 %1021
  %v1023 = vlaneseq
  %v1024 = vshrl.u32 %v1023, 7
  %v1025 = vsub.s32 1, %v1024
  %v1026 = vrot.slane %v959, %v1025
  %1028 = vbcast.lane.b32.xlu0 %v1026, 256
  %v1029 = vpop.permute.xlu0 %1028
  %v1030 = vlaneseq
  %v1031 = vshrl.u32 %v1030, 7
  %v1032 = vsub.s32 2, %v1031
  %v1033 = vrot.slane %v959, %v1032
  %1035 = vbcast.lane.b32.xlu0 %v1033, 256
  %v1036 = vpop.permute.xlu0 %1035
  %v1037 = vlaneseq
  %v1038 = vshrl.u32 %v1037, 7
  %v1039 = vsub.s32 3, %v1038
  %v1040 = vrot.slane %v959, %v1039
  %1042 = vbcast.lane.b32.xlu0 %v1040, 256
  %v1043 = vpop.permute.xlu0 %1042
  %v1044 = vlaneseq
  %v1045 = vshrl.u32 %v1044, 7
  %v1046 = vsub.s32 4, %v1045
  %v1047 = vrot.slane %v959, %v1046
  %1049 = vbcast.lane.b32.xlu0 %v1047, 256
  %v1050 = vpop.permute.xlu0 %1049
  %v1051 = vlaneseq
  %v1052 = vshrl.u32 %v1051, 7
  %v1053 = vsub.s32 5, %v1052
  %v1054 = vrot.slane %v959, %v1053
  %1056 = vbcast.lane.b32.xlu0 %v1054, 256
  %v1057 = vpop.permute.xlu0 %1056
  %v1058 = vlaneseq
  %v1059 = vshrl.u32 %v1058, 7
  %v1060 = vsub.s32 6, %v1059
  %v1061 = vrot.slane %v959, %v1060
  %1063 = vbcast.lane.b32.xlu0 %v1061, 256
  %v1064 = vpop.permute.xlu0 %1063
  %v1065 = vlaneseq
  %v1066 = vshrl.u32 %v1065, 7
  %v1067 = vsub.s32 7, %v1066
  %v1068 = vrot.slane %v959, %v1067
  %1070 = vbcast.lane.b32.xlu0 %v1068, 256
  %v1071 = vpop.permute.xlu0 %1070
  %v1072 = vmul.f32 %v96, %v966
  %v1073 = vmul.f32 %v97, %v973
  %v1074 = vmul.f32 %v98, %v980
  %v1075 = vmul.f32 %v99, %v987
  %v1076 = vmul.f32 %v100, %v994
  %v1077 = vmul.f32 %v101, %v1001
  %v1078 = vmul.f32 %v102, %v1008
  %v1079 = vmul.f32 %v103, %v1015
  %v1080 = vmul.f32 %v104, %v1022
  %v1081 = vmul.f32 %v105, %v1029
  %v1082 = vmul.f32 %v106, %v1036
  %v1083 = vmul.f32 %v107, %v1043
  %v1084 = vmul.f32 %v108, %v1050
  %v1085 = vmul.f32 %v109, %v1057
  %v1086 = vmul.f32 %v110, %v1064
  %v1087 = vmul.f32 %v111, %v1071
  %v1088 = vsel %vm116, %v1072, 0.0
  %v1089 = vrot.slane %v1088, 4
  %v1090 = vadd.f32 %v1088, %v1089
  %v1091 = vrot.slane %v1090, 2
  %v1092 = vadd.f32 %v1090, %v1091
  %v1093 = vrot.slane %v1092, 1
  %v1094 = vadd.f32 %v1092, %v1093
  %v1095 = vsel %vm116, %v1073, 0.0
  %v1096 = vrot.slane %v1095, 4
  %v1097 = vadd.f32 %v1095, %v1096
  %v1098 = vrot.slane %v1097, 2
  %v1099 = vadd.f32 %v1097, %v1098
  %v1100 = vrot.slane %v1099, 1
  %v1101 = vadd.f32 %v1099, %v1100
  %v1102 = vsel %vm116, %v1074, 0.0
  %v1103 = vrot.slane %v1102, 4
  %v1104 = vadd.f32 %v1102, %v1103
  %v1105 = vrot.slane %v1104, 2
  %v1106 = vadd.f32 %v1104, %v1105
  %v1107 = vrot.slane %v1106, 1
  %v1108 = vadd.f32 %v1106, %v1107
  %v1109 = vsel %vm116, %v1075, 0.0
  %v1110 = vrot.slane %v1109, 4
  %v1111 = vadd.f32 %v1109, %v1110
  %v1112 = vrot.slane %v1111, 2
  %v1113 = vadd.f32 %v1111, %v1112
  %v1114 = vrot.slane %v1113, 1
  %v1115 = vadd.f32 %v1113, %v1114
  %v1116 = vsel %vm116, %v1076, 0.0
  %v1117 = vrot.slane %v1116, 4
  %v1118 = vadd.f32 %v1116, %v1117
  %v1119 = vrot.slane %v1118, 2
  %v1120 = vadd.f32 %v1118, %v1119
  %v1121 = vrot.slane %v1120, 1
  %v1122 = vadd.f32 %v1120, %v1121
  %v1123 = vsel %vm116, %v1077, 0.0
  %v1124 = vrot.slane %v1123, 4
  %v1125 = vadd.f32 %v1123, %v1124
  %v1126 = vrot.slane %v1125, 2
  %v1127 = vadd.f32 %v1125, %v1126
  %v1128 = vrot.slane %v1127, 1
  %v1129 = vadd.f32 %v1127, %v1128
  %v1130 = vsel %vm116, %v1078, 0.0
  %v1131 = vrot.slane %v1130, 4
  %v1132 = vadd.f32 %v1130, %v1131
  %v1133 = vrot.slane %v1132, 2
  %v1134 = vadd.f32 %v1132, %v1133
  %v1135 = vrot.slane %v1134, 1
  %v1136 = vadd.f32 %v1134, %v1135
  %v1137 = vsel %vm116, %v1079, 0.0
  %v1138 = vrot.slane %v1137, 4
  %v1139 = vadd.f32 %v1137, %v1138
  %v1140 = vrot.slane %v1139, 2
  %v1141 = vadd.f32 %v1139, %v1140
  %v1142 = vrot.slane %v1141, 1
  %v1143 = vadd.f32 %v1141, %v1142
  %v1144 = vsel %vm116, %v1080, 0.0
  %v1145 = vrot.slane %v1144, 4
  %v1146 = vadd.f32 %v1144, %v1145
  %v1147 = vrot.slane %v1146, 2
  %v1148 = vadd.f32 %v1146, %v1147
  %v1149 = vrot.slane %v1148, 1
  %v1150 = vadd.f32 %v1148, %v1149
  %v1151 = vsel %vm116, %v1081, 0.0
  %v1152 = vrot.slane %v1151, 4
  %v1153 = vadd.f32 %v1151, %v1152
  %v1154 = vrot.slane %v1153, 2
  %v1155 = vadd.f32 %v1153, %v1154
  %v1156 = vrot.slane %v1155, 1
  %v1157 = vadd.f32 %v1155, %v1156
  %v1158 = vsel %vm116, %v1082, 0.0
  %v1159 = vrot.slane %v1158, 4
  %v1160 = vadd.f32 %v1158, %v1159
  %v1161 = vrot.slane %v1160, 2
  %v1162 = vadd.f32 %v1160, %v1161
  %v1163 = vrot.slane %v1162, 1
  %v1164 = vadd.f32 %v1162, %v1163
  %v1165 = vsel %vm116, %v1083, 0.0
  %v1166 = vrot.slane %v1165, 4
  %v1167 = vadd.f32 %v1165, %v1166
  %v1168 = vrot.slane %v1167, 2
  %v1169 = vadd.f32 %v1167, %v1168
  %v1170 = vrot.slane %v1169, 1
  %v1171 = vadd.f32 %v1169, %v1170
  %v1172 = vsel %vm116, %v1084, 0.0
  %v1173 = vrot.slane %v1172, 4
  %v1174 = vadd.f32 %v1172, %v1173
  %v1175 = vrot.slane %v1174, 2
  %v1176 = vadd.f32 %v1174, %v1175
  %v1177 = vrot.slane %v1176, 1
  %v1178 = vadd.f32 %v1176, %v1177
  %v1179 = vsel %vm116, %v1085, 0.0
  %v1180 = vrot.slane %v1179, 4
  %v1181 = vadd.f32 %v1179, %v1180
  %v1182 = vrot.slane %v1181, 2
  %v1183 = vadd.f32 %v1181, %v1182
  %v1184 = vrot.slane %v1183, 1
  %v1185 = vadd.f32 %v1183, %v1184
  %v1186 = vsel %vm116, %v1086, 0.0
  %v1187 = vrot.slane %v1186, 4
  %v1188 = vadd.f32 %v1186, %v1187
  %v1189 = vrot.slane %v1188, 2
  %v1190 = vadd.f32 %v1188, %v1189
  %v1191 = vrot.slane %v1190, 1
  %v1192 = vadd.f32 %v1190, %v1191
  %v1193 = vsel %vm116, %v1087, 0.0
  %v1194 = vrot.slane %v1193, 4
  %v1195 = vadd.f32 %v1193, %v1194
  %v1196 = vrot.slane %v1195, 2
  %v1197 = vadd.f32 %v1195, %v1196
  %v1198 = vrot.slane %v1197, 1
  %v1199 = vadd.f32 %v1197, %v1198
  %v1200 = vmul.f32 %v90, %v93
  %v1201 = vmul.f32 %v91, %v94
  %v1202 = vmul.f32 %v1094, %v1150
  %v1203 = vmul.f32 %v1101, %v1157
  %v1204 = vmul.f32 %v1108, %v1164
  %v1205 = vmul.f32 %v1115, %v1171
  %v1206 = vmul.f32 %v1122, %v1178
  %v1207 = vmul.f32 %v1129, %v1185
  %v1208 = vmul.f32 %v1136, %v1192
  %v1209 = vmul.f32 %v1143, %v1199
  %v1210 = vmul.f32 %v92, %v95
  %v1212 = vsel %vm116, %v91, 0
  %1214 = vmatprep.subr.mxu0 0.0
  %1215 = vmatpush1.msra.mxu0 %v36
  %1216 = vmatprep.subr.mxu0 0.0
  %1217 = vmatpush1.msra.mxu0 %v37
  %1218 = vmatprep.subr.mxu0 0.0
  %1219 = vmatpush1.msra.mxu0 %v38
  %1220 = vmatprep.subr.mxu0 0.0
  %1221 = vmatpush1.msra.mxu0 %v39
  %1222 = vmatprep.subr.mxu0 0.0
  %1223 = vmatpush1.msra.mxu0 0.0
  %1224 = vmatprep.subr.mxu0 0.0
  %1225 = vmatpush1.msra.mxu0 0.0
  %1226 = vmatprep.subr.mxu0 0.0
  %1227 = vmatpush1.msra.mxu0 0.0
  %1228 = vmatprep.subr.mxu0 0.0
  %1229 = vmatpush1.msra.mxu0 0.0
  %1230 = vmatprep.subr.mxu0 0.0
  %1231 = vmatpush1.msra.mxu0 0.0
  %1232 = vmatprep.subr.mxu0 0.0
  %1233 = vmatpush1.msra.mxu0 0.0
  %1234 = vmatprep.subr.mxu0 0.0
  %1235 = vmatpush1.msra.mxu0 0.0
  %1236 = vmatprep.subr.mxu0 0.0
  %1237 = vmatpush1.msra.mxu0 0.0
  %1238 = vmatprep.subr.mxu0 0.0
  %1239 = vmatpush1.msra.mxu0 0.0
  %1240 = vmatprep.subr.mxu0 0.0
  %1241 = vmatpush1.msra.mxu0 0.0
  %1242 = vmatprep.subr.mxu0 0.0
  %1243 = vmatpush1.msra.mxu0 0.0
  %1244 = vmatprep.subr.mxu0 0.0
  %1245 = vmatpush1.msra.mxu0 0.0
  %1246 = vmatprep.subr.mxu0 0.0
  %1247 = vmatpush1.msra.mxu0 0.0
  %1248 = vmatprep.subr.mxu0 0.0
  %1249 = vmatpush1.msra.mxu0 0.0
  %1250 = vmatprep.subr.mxu0 0.0
  %1251 = vmatpush1.msra.mxu0 0.0
  %1252 = vmatprep.subr.mxu0 0.0
  %1253 = vmatpush1.msra.mxu0 0.0
  %1254 = vmatprep.subr.mxu0 0.0
  %1255 = vmatpush1.msra.mxu0 0.0
  %1256 = vmatprep.subr.mxu0 0.0
  %1257 = vmatpush1.msra.mxu0 0.0
  %1258 = vmatprep.subr.mxu0 0.0
  %1259 = vmatpush1.msra.mxu0 0.0
  %1260 = vmatprep.subr.mxu0 0.0
  %1261 = vmatpush1.msra.mxu0 0.0
  %1262 = vmatprep.subr.mxu0 0.0
  %1263 = vmatpush1.msra.mxu0 0.0
  %1264 = vmatprep.subr.mxu0 0.0
  %1265 = vmatpush1.msra.mxu0 0.0
  %1266 = vmatprep.subr.mxu0 0.0
  %1267 = vmatpush1.msra.mxu0 0.0
  %1268 = vmatprep.subr.mxu0 0.0
  %1269 = vmatpush1.msra.mxu0 0.0
  %1270 = vmatprep.subr.mxu0 0.0
  %1271 = vmatpush1.msra.mxu0 0.0
  %1272 = vmatprep.subr.mxu0 0.0
  %1273 = vmatpush1.msra.mxu0 0.0
  %1274 = vmatprep.subr.mxu0 0.0
  %1275 = vmatpush1.msra.mxu0 0.0
  %1276 = vmatprep.subr.mxu0 0.0
  %1277 = vmatpush1.msra.mxu0 0.0
  %1278 = vmatprep.mubr.f32.mxu0 0.0
  %1279 = vmatmul.mubr.f32.gmra.mrb[0].mxu0 %v1212
  %v1280 = vpop.f32.mrb[0].mxu0
  %v1281 = vadd.f32 0.0, %v1280
  %v1282 = vpop.f32.mrb[0].mxu0
  %1283 = vdwg.mxu0
  %v1285 = vsel %vm116, %v90, 0
  %1287 = vmatprep.subr.mxu0 0.0
  %1288 = vmatpush1.msra.mxu0 %v32
  %1289 = vmatprep.subr.mxu0 0.0
  %1290 = vmatpush1.msra.mxu0 %v33
  %1291 = vmatprep.subr.mxu0 0.0
  %1292 = vmatpush1.msra.mxu0 %v34
  %1293 = vmatprep.subr.mxu0 0.0
  %1294 = vmatpush1.msra.mxu0 %v35
  %1295 = vmatprep.subr.mxu0 0.0
  %1296 = vmatpush1.msra.mxu0 0.0
  %1297 = vmatprep.subr.mxu0 0.0
  %1298 = vmatpush1.msra.mxu0 0.0
  %1299 = vmatprep.subr.mxu0 0.0
  %1300 = vmatpush1.msra.mxu0 0.0
  %1301 = vmatprep.subr.mxu0 0.0
  %1302 = vmatpush1.msra.mxu0 0.0
  %1303 = vmatprep.subr.mxu0 0.0
  %1304 = vmatpush1.msra.mxu0 0.0
  %1305 = vmatprep.subr.mxu0 0.0
  %1306 = vmatpush1.msra.mxu0 0.0
  %1307 = vmatprep.subr.mxu0 0.0
  %1308 = vmatpush1.msra.mxu0 0.0
  %1309 = vmatprep.subr.mxu0 0.0
  %1310 = vmatpush1.msra.mxu0 0.0
  %1311 = vmatprep.subr.mxu0 0.0
  %1312 = vmatpush1.msra.mxu0 0.0
  %1313 = vmatprep.subr.mxu0 0.0
  %1314 = vmatpush1.msra.mxu0 0.0
  %1315 = vmatprep.subr.mxu0 0.0
  %1316 = vmatpush1.msra.mxu0 0.0
  %1317 = vmatprep.subr.mxu0 0.0
  %1318 = vmatpush1.msra.mxu0 0.0
  %1319 = vmatprep.subr.mxu0 0.0
  %1320 = vmatpush1.msra.mxu0 0.0
  %1321 = vmatprep.subr.mxu0 0.0
  %1322 = vmatpush1.msra.mxu0 0.0
  %1323 = vmatprep.subr.mxu0 0.0
  %1324 = vmatpush1.msra.mxu0 0.0
  %1325 = vmatprep.subr.mxu0 0.0
  %1326 = vmatpush1.msra.mxu0 0.0
  %1327 = vmatprep.subr.mxu0 0.0
  %1328 = vmatpush1.msra.mxu0 0.0
  %1329 = vmatprep.subr.mxu0 0.0
  %1330 = vmatpush1.msra.mxu0 0.0
  %1331 = vmatprep.subr.mxu0 0.0
  %1332 = vmatpush1.msra.mxu0 0.0
  %1333 = vmatprep.subr.mxu0 0.0
  %1334 = vmatpush1.msra.mxu0 0.0
  %1335 = vmatprep.subr.mxu0 0.0
  %1336 = vmatpush1.msra.mxu0 0.0
  %1337 = vmatprep.subr.mxu0 0.0
  %1338 = vmatpush1.msra.mxu0 0.0
  %1339 = vmatprep.subr.mxu0 0.0
  %1340 = vmatpush1.msra.mxu0 0.0
  %1341 = vmatprep.subr.mxu0 0.0
  %1342 = vmatpush1.msra.mxu0 0.0
  %1343 = vmatprep.subr.mxu0 0.0
  %1344 = vmatpush1.msra.mxu0 0.0
  %1345 = vmatprep.subr.mxu0 0.0
  %1346 = vmatpush1.msra.mxu0 0.0
  %1347 = vmatprep.subr.mxu0 0.0
  %1348 = vmatpush1.msra.mxu0 0.0
  %1349 = vmatprep.subr.mxu0 0.0
  %1350 = vmatpush1.msra.mxu0 0.0
  %1351 = vmatprep.mubr.f32.mxu0 0.0
  %1352 = vmatmul.mubr.f32.gmra.mrb[0].mxu0 %v1285
  %v1353 = vpop.f32.mrb[0].mxu0
  %v1354 = vadd.f32 %v1281, %v1353
  %v1355 = vpop.f32.mrb[0].mxu0
  %1356 = vdwg.mxu0
  %v1365 = vsel %vm912, %v1101, %v1094
  %v1366 = vsel %vm914, %v1108, %v1365
  %v1367 = vsel %vm916, %v1115, %v1366
  %v1368 = vsel %vm918, %v1122, %v1367
  %v1369 = vsel %vm920, %v1129, %v1368
  %v1370 = vsel %vm922, %v1136, %v1369
  %v1371 = vsel %vm924, %v1143, %v1370
  %v1372 = vsel %vm116, %v1371, 0
  %1374 = vmatprep.subr.mxu0 0.0
  %1375 = vmatpush1.msra.mxu0 %v40
  %1376 = vmatprep.subr.mxu0 0.0
  %1377 = vmatpush1.msra.mxu0 %v41
  %1378 = vmatprep.subr.mxu0 0.0
  %1379 = vmatpush1.msra.mxu0 %v42
  %1380 = vmatprep.subr.mxu0 0.0
  %1381 = vmatpush1.msra.mxu0 %v43
  %1382 = vmatprep.subr.mxu0 0.0
  %1383 = vmatpush1.msra.mxu0 0.0
  %1384 = vmatprep.subr.mxu0 0.0
  %1385 = vmatpush1.msra.mxu0 0.0
  %1386 = vmatprep.subr.mxu0 0.0
  %1387 = vmatpush1.msra.mxu0 0.0
  %1388 = vmatprep.subr.mxu0 0.0
  %1389 = vmatpush1.msra.mxu0 0.0
  %1390 = vmatprep.subr.mxu0 0.0
  %1391 = vmatpush1.msra.mxu0 0.0
  %1392 = vmatprep.subr.mxu0 0.0
  %1393 = vmatpush1.msra.mxu0 0.0
  %1394 = vmatprep.subr.mxu0 0.0
  %1395 = vmatpush1.msra.mxu0 0.0
  %1396 = vmatprep.subr.mxu0 0.0
  %1397 = vmatpush1.msra.mxu0 0.0
  %1398 = vmatprep.subr.mxu0 0.0
  %1399 = vmatpush1.msra.mxu0 0.0
  %1400 = vmatprep.subr.mxu0 0.0
  %1401 = vmatpush1.msra.mxu0 0.0
  %1402 = vmatprep.subr.mxu0 0.0
  %1403 = vmatpush1.msra.mxu0 0.0
  %1404 = vmatprep.subr.mxu0 0.0
  %1405 = vmatpush1.msra.mxu0 0.0
  %1406 = vmatprep.subr.mxu0 0.0
  %1407 = vmatpush1.msra.mxu0 0.0
  %1408 = vmatprep.subr.mxu0 0.0
  %1409 = vmatpush1.msra.mxu0 0.0
  %1410 = vmatprep.subr.mxu0 0.0
  %1411 = vmatpush1.msra.mxu0 0.0
  %1412 = vmatprep.subr.mxu0 0.0
  %1413 = vmatpush1.msra.mxu0 0.0
  %1414 = vmatprep.subr.mxu0 0.0
  %1415 = vmatpush1.msra.mxu0 0.0
  %1416 = vmatprep.subr.mxu0 0.0
  %1417 = vmatpush1.msra.mxu0 0.0
  %1418 = vmatprep.subr.mxu0 0.0
  %1419 = vmatpush1.msra.mxu0 0.0
  %1420 = vmatprep.subr.mxu0 0.0
  %1421 = vmatpush1.msra.mxu0 0.0
  %1422 = vmatprep.subr.mxu0 0.0
  %1423 = vmatpush1.msra.mxu0 0.0
  %1424 = vmatprep.subr.mxu0 0.0
  %1425 = vmatpush1.msra.mxu0 0.0
  %1426 = vmatprep.subr.mxu0 0.0
  %1427 = vmatpush1.msra.mxu0 0.0
  %1428 = vmatprep.subr.mxu0 0.0
  %1429 = vmatpush1.msra.mxu0 0.0
  %1430 = vmatprep.subr.mxu0 0.0
  %1431 = vmatpush1.msra.mxu0 0.0
  %1432 = vmatprep.subr.mxu0 0.0
  %1433 = vmatpush1.msra.mxu0 0.0
  %1434 = vmatprep.subr.mxu0 0.0
  %1435 = vmatpush1.msra.mxu0 0.0
  %1436 = vmatprep.subr.mxu0 0.0
  %1437 = vmatpush1.msra.mxu0 0.0
  %1438 = vmatprep.mubr.f32.mxu0 0.0
  %1439 = vmatmul.mubr.f32.gmra.mrb[0].mxu0 %v1372
  %v1440 = vpop.f32.mrb[0].mxu0
  %v1441 = vadd.f32 0.0, %v1440
  %v1442 = vpop.f32.mrb[0].mxu0
  %1443 = vdwg.mxu0
  %v1444 = vadd.f32 %v1354, %v1441
  %v1446 = vsel %vm116, %v92, 0
  %1448 = vmatprep.subr.mxu0 0.0
  %1449 = vmatpush1.msra.mxu0 %v44
  %1450 = vmatprep.subr.mxu0 0.0
  %1451 = vmatpush1.msra.mxu0 %v45
  %1452 = vmatprep.subr.mxu0 0.0
  %1453 = vmatpush1.msra.mxu0 %v46
  %1454 = vmatprep.subr.mxu0 0.0
  %1455 = vmatpush1.msra.mxu0 %v47
  %1456 = vmatprep.subr.mxu0 0.0
  %1457 = vmatpush1.msra.mxu0 0.0
  %1458 = vmatprep.subr.mxu0 0.0
  %1459 = vmatpush1.msra.mxu0 0.0
  %1460 = vmatprep.subr.mxu0 0.0
  %1461 = vmatpush1.msra.mxu0 0.0
  %1462 = vmatprep.subr.mxu0 0.0
  %1463 = vmatpush1.msra.mxu0 0.0
  %1464 = vmatprep.subr.mxu0 0.0
  %1465 = vmatpush1.msra.mxu0 0.0
  %1466 = vmatprep.subr.mxu0 0.0
  %1467 = vmatpush1.msra.mxu0 0.0
  %1468 = vmatprep.subr.mxu0 0.0
  %1469 = vmatpush1.msra.mxu0 0.0
  %1470 = vmatprep.subr.mxu0 0.0
  %1471 = vmatpush1.msra.mxu0 0.0
  %1472 = vmatprep.subr.mxu0 0.0
  %1473 = vmatpush1.msra.mxu0 0.0
  %1474 = vmatprep.subr.mxu0 0.0
  %1475 = vmatpush1.msra.mxu0 0.0
  %1476 = vmatprep.subr.mxu0 0.0
  %1477 = vmatpush1.msra.mxu0 0.0
  %1478 = vmatprep.subr.mxu0 0.0
  %1479 = vmatpush1.msra.mxu0 0.0
  %1480 = vmatprep.subr.mxu0 0.0
  %1481 = vmatpush1.msra.mxu0 0.0
  %1482 = vmatprep.subr.mxu0 0.0
  %1483 = vmatpush1.msra.mxu0 0.0
  %1484 = vmatprep.subr.mxu0 0.0
  %1485 = vmatpush1.msra.mxu0 0.0
  %1486 = vmatprep.subr.mxu0 0.0
  %1487 = vmatpush1.msra.mxu0 0.0
  %1488 = vmatprep.subr.mxu0 0.0
  %1489 = vmatpush1.msra.mxu0 0.0
  %1490 = vmatprep.subr.mxu0 0.0
  %1491 = vmatpush1.msra.mxu0 0.0
  %1492 = vmatprep.subr.mxu0 0.0
  %1493 = vmatpush1.msra.mxu0 0.0
  %1494 = vmatprep.subr.mxu0 0.0
  %1495 = vmatpush1.msra.mxu0 0.0
  %1496 = vmatprep.subr.mxu0 0.0
  %1497 = vmatpush1.msra.mxu0 0.0
  %1498 = vmatprep.subr.mxu0 0.0
  %1499 = vmatpush1.msra.mxu0 0.0
  %1500 = vmatprep.subr.mxu0 0.0
  %1501 = vmatpush1.msra.mxu0 0.0
  %1502 = vmatprep.subr.mxu0 0.0
  %1503 = vmatpush1.msra.mxu0 0.0
  %1504 = vmatprep.subr.mxu0 0.0
  %1505 = vmatpush1.msra.mxu0 0.0
  %1506 = vmatprep.subr.mxu0 0.0
  %1507 = vmatpush1.msra.mxu0 0.0
  %1508 = vmatprep.subr.mxu0 0.0
  %1509 = vmatpush1.msra.mxu0 0.0
  %1510 = vmatprep.subr.mxu0 0.0
  %1511 = vmatpush1.msra.mxu0 0.0
  %1512 = vmatprep.mubr.f32.mxu0 0.0
  %1513 = vmatmul.mubr.f32.gmra.mrb[0].mxu0 %v1446
  %v1514 = vpop.f32.mrb[0].mxu0
  %v1515 = vadd.f32 0.0, %v1514
  %v1516 = vpop.f32.mrb[0].mxu0
  %1517 = vdwg.mxu0
  %v1518 = vadd.f32 %v1444, %v1515
  %v1520 = vsel %vm116, %v93, 0
  %1522 = vmatprep.subr.mxu0 0.0
  %1523 = vmatpush1.msra.mxu0 %v48
  %1524 = vmatprep.subr.mxu0 0.0
  %1525 = vmatpush1.msra.mxu0 %v49
  %1526 = vmatprep.subr.mxu0 0.0
  %1527 = vmatpush1.msra.mxu0 %v50
  %1528 = vmatprep.subr.mxu0 0.0
  %1529 = vmatpush1.msra.mxu0 %v51
  %1530 = vmatprep.subr.mxu0 0.0
  %1531 = vmatpush1.msra.mxu0 0.0
  %1532 = vmatprep.subr.mxu0 0.0
  %1533 = vmatpush1.msra.mxu0 0.0
  %1534 = vmatprep.subr.mxu0 0.0
  %1535 = vmatpush1.msra.mxu0 0.0
  %1536 = vmatprep.subr.mxu0 0.0
  %1537 = vmatpush1.msra.mxu0 0.0
  %1538 = vmatprep.subr.mxu0 0.0
  %1539 = vmatpush1.msra.mxu0 0.0
  %1540 = vmatprep.subr.mxu0 0.0
  %1541 = vmatpush1.msra.mxu0 0.0
  %1542 = vmatprep.subr.mxu0 0.0
  %1543 = vmatpush1.msra.mxu0 0.0
  %1544 = vmatprep.subr.mxu0 0.0
  %1545 = vmatpush1.msra.mxu0 0.0
  %1546 = vmatprep.subr.mxu0 0.0
  %1547 = vmatpush1.msra.mxu0 0.0
  %1548 = vmatprep.subr.mxu0 0.0
  %1549 = vmatpush1.msra.mxu0 0.0
  %1550 = vmatprep.subr.mxu0 0.0
  %1551 = vmatpush1.msra.mxu0 0.0
  %1552 = vmatprep.subr.mxu0 0.0
  %1553 = vmatpush1.msra.mxu0 0.0
  %1554 = vmatprep.subr.mxu0 0.0
  %1555 = vmatpush1.msra.mxu0 0.0
  %1556 = vmatprep.subr.mxu0 0.0
  %1557 = vmatpush1.msra.mxu0 0.0
  %1558 = vmatprep.subr.mxu0 0.0
  %1559 = vmatpush1.msra.mxu0 0.0
  %1560 = vmatprep.subr.mxu0 0.0
  %1561 = vmatpush1.msra.mxu0 0.0
  %1562 = vmatprep.subr.mxu0 0.0
  %1563 = vmatpush1.msra.mxu0 0.0
  %1564 = vmatprep.subr.mxu0 0.0
  %1565 = vmatpush1.msra.mxu0 0.0
  %1566 = vmatprep.subr.mxu0 0.0
  %1567 = vmatpush1.msra.mxu0 0.0
  %1568 = vmatprep.subr.mxu0 0.0
  %1569 = vmatpush1.msra.mxu0 0.0
  %1570 = vmatprep.subr.mxu0 0.0
  %1571 = vmatpush1.msra.mxu0 0.0
  %1572 = vmatprep.subr.mxu0 0.0
  %1573 = vmatpush1.msra.mxu0 0.0
  %1574 = vmatprep.subr.mxu0 0.0
  %1575 = vmatpush1.msra.mxu0 0.0
  %1576 = vmatprep.subr.mxu0 0.0
  %1577 = vmatpush1.msra.mxu0 0.0
  %1578 = vmatprep.subr.mxu0 0.0
  %1579 = vmatpush1.msra.mxu0 0.0
  %1580 = vmatprep.subr.mxu0 0.0
  %1581 = vmatpush1.msra.mxu0 0.0
  %1582 = vmatprep.subr.mxu0 0.0
  %1583 = vmatpush1.msra.mxu0 0.0
  %1584 = vmatprep.subr.mxu0 0.0
  %1585 = vmatpush1.msra.mxu0 0.0
  %1586 = vmatprep.mubr.f32.mxu0 0.0
  %1587 = vmatmul.mubr.f32.gmra.mrb[0].mxu0 %v1520
  %v1588 = vpop.f32.mrb[0].mxu0
  %v1589 = vadd.f32 0.0, %v1588
  %v1590 = vpop.f32.mrb[0].mxu0
  %1591 = vdwg.mxu0
  %v1592 = vadd.f32 %v1518, %v1589
  %v1594 = vsel %vm116, %v94, 0
  %1596 = vmatprep.subr.mxu0 0.0
  %1597 = vmatpush1.msra.mxu0 %v52
  %1598 = vmatprep.subr.mxu0 0.0
  %1599 = vmatpush1.msra.mxu0 %v53
  %1600 = vmatprep.subr.mxu0 0.0
  %1601 = vmatpush1.msra.mxu0 %v54
  %1602 = vmatprep.subr.mxu0 0.0
  %1603 = vmatpush1.msra.mxu0 %v55
  %1604 = vmatprep.subr.mxu0 0.0
  %1605 = vmatpush1.msra.mxu0 0.0
  %1606 = vmatprep.subr.mxu0 0.0
  %1607 = vmatpush1.msra.mxu0 0.0
  %1608 = vmatprep.subr.mxu0 0.0
  %1609 = vmatpush1.msra.mxu0 0.0
  %1610 = vmatprep.subr.mxu0 0.0
  %1611 = vmatpush1.msra.mxu0 0.0
  %1612 = vmatprep.subr.mxu0 0.0
  %1613 = vmatpush1.msra.mxu0 0.0
  %1614 = vmatprep.subr.mxu0 0.0
  %1615 = vmatpush1.msra.mxu0 0.0
  %1616 = vmatprep.subr.mxu0 0.0
  %1617 = vmatpush1.msra.mxu0 0.0
  %1618 = vmatprep.subr.mxu0 0.0
  %1619 = vmatpush1.msra.mxu0 0.0
  %1620 = vmatprep.subr.mxu0 0.0
  %1621 = vmatpush1.msra.mxu0 0.0
  %1622 = vmatprep.subr.mxu0 0.0
  %1623 = vmatpush1.msra.mxu0 0.0
  %1624 = vmatprep.subr.mxu0 0.0
  %1625 = vmatpush1.msra.mxu0 0.0
  %1626 = vmatprep.subr.mxu0 0.0
  %1627 = vmatpush1.msra.mxu0 0.0
  %1628 = vmatprep.subr.mxu0 0.0
  %1629 = vmatpush1.msra.mxu0 0.0
  %1630 = vmatprep.subr.mxu0 0.0
  %1631 = vmatpush1.msra.mxu0 0.0
  %1632 = vmatprep.subr.mxu0 0.0
  %1633 = vmatpush1.msra.mxu0 0.0
  %1634 = vmatprep.subr.mxu0 0.0
  %1635 = vmatpush1.msra.mxu0 0.0
  %1636 = vmatprep.subr.mxu0 0.0
  %1637 = vmatpush1.msra.mxu0 0.0
  %1638 = vmatprep.subr.mxu0 0.0
  %1639 = vmatpush1.msra.mxu0 0.0
  %1640 = vmatprep.subr.mxu0 0.0
  %1641 = vmatpush1.msra.mxu0 0.0
  %1642 = vmatprep.subr.mxu0 0.0
  %1643 = vmatpush1.msra.mxu0 0.0
  %1644 = vmatprep.subr.mxu0 0.0
  %1645 = vmatpush1.msra.mxu0 0.0
  %1646 = vmatprep.subr.mxu0 0.0
  %1647 = vmatpush1.msra.mxu0 0.0
  %1648 = vmatprep.subr.mxu0 0.0
  %1649 = vmatpush1.msra.mxu0 0.0
  %1650 = vmatprep.subr.mxu0 0.0
  %1651 = vmatpush1.msra.mxu0 0.0
  %1652 = vmatprep.subr.mxu0 0.0
  %1653 = vmatpush1.msra.mxu0 0.0
  %1654 = vmatprep.subr.mxu0 0.0
  %1655 = vmatpush1.msra.mxu0 0.0
  %1656 = vmatprep.subr.mxu0 0.0
  %1657 = vmatpush1.msra.mxu0 0.0
  %1658 = vmatprep.subr.mxu0 0.0
  %1659 = vmatpush1.msra.mxu0 0.0
  %1660 = vmatprep.mubr.f32.mxu0 0.0
  %1661 = vmatmul.mubr.f32.gmra.mrb[0].mxu0 %v1594
  %v1662 = vpop.f32.mrb[0].mxu0
  %v1663 = vadd.f32 0.0, %v1662
  %v1664 = vpop.f32.mrb[0].mxu0
  %1665 = vdwg.mxu0
  %v1666 = vadd.f32 %v1592, %v1663
  %v1675 = vsel %vm912, %v1157, %v1150
  %v1676 = vsel %vm914, %v1164, %v1675
  %v1677 = vsel %vm916, %v1171, %v1676
  %v1678 = vsel %vm918, %v1178, %v1677
  %v1679 = vsel %vm920, %v1185, %v1678
  %v1680 = vsel %vm922, %v1192, %v1679
  %v1681 = vsel %vm924, %v1199, %v1680
  %v1682 = vsel %vm116, %v1681, 0
  %1684 = vmatprep.subr.mxu0 0.0
  %1685 = vmatpush1.msra.mxu0 %v56
  %1686 = vmatprep.subr.mxu0 0.0
  %1687 = vmatpush1.msra.mxu0 %v57
  %1688 = vmatprep.subr.mxu0 0.0
  %1689 = vmatpush1.msra.mxu0 %v58
  %1690 = vmatprep.subr.mxu0 0.0
  %1691 = vmatpush1.msra.mxu0 %v59
  %1692 = vmatprep.subr.mxu0 0.0
  %1693 = vmatpush1.msra.mxu0 0.0
  %1694 = vmatprep.subr.mxu0 0.0
  %1695 = vmatpush1.msra.mxu0 0.0
  %1696 = vmatprep.subr.mxu0 0.0
  %1697 = vmatpush1.msra.mxu0 0.0
  %1698 = vmatprep.subr.mxu0 0.0
  %1699 = vmatpush1.msra.mxu0 0.0
  %1700 = vmatprep.subr.mxu0 0.0
  %1701 = vmatpush1.msra.mxu0 0.0
  %1702 = vmatprep.subr.mxu0 0.0
  %1703 = vmatpush1.msra.mxu0 0.0
  %1704 = vmatprep.subr.mxu0 0.0
  %1705 = vmatpush1.msra.mxu0 0.0
  %1706 = vmatprep.subr.mxu0 0.0
  %1707 = vmatpush1.msra.mxu0 0.0
  %1708 = vmatprep.subr.mxu0 0.0
  %1709 = vmatpush1.msra.mxu0 0.0
  %1710 = vmatprep.subr.mxu0 0.0
  %1711 = vmatpush1.msra.mxu0 0.0
  %1712 = vmatprep.subr.mxu0 0.0
  %1713 = vmatpush1.msra.mxu0 0.0
  %1714 = vmatprep.subr.mxu0 0.0
  %1715 = vmatpush1.msra.mxu0 0.0
  %1716 = vmatprep.subr.mxu0 0.0
  %1717 = vmatpush1.msra.mxu0 0.0
  %1718 = vmatprep.subr.mxu0 0.0
  %1719 = vmatpush1.msra.mxu0 0.0
  %1720 = vmatprep.subr.mxu0 0.0
  %1721 = vmatpush1.msra.mxu0 0.0
  %1722 = vmatprep.subr.mxu0 0.0
  %1723 = vmatpush1.msra.mxu0 0.0
  %1724 = vmatprep.subr.mxu0 0.0
  %1725 = vmatpush1.msra.mxu0 0.0
  %1726 = vmatprep.subr.mxu0 0.0
  %1727 = vmatpush1.msra.mxu0 0.0
  %1728 = vmatprep.subr.mxu0 0.0
  %1729 = vmatpush1.msra.mxu0 0.0
  %1730 = vmatprep.subr.mxu0 0.0
  %1731 = vmatpush1.msra.mxu0 0.0
  %1732 = vmatprep.subr.mxu0 0.0
  %1733 = vmatpush1.msra.mxu0 0.0
  %1734 = vmatprep.subr.mxu0 0.0
  %1735 = vmatpush1.msra.mxu0 0.0
  %1736 = vmatprep.subr.mxu0 0.0
  %1737 = vmatpush1.msra.mxu0 0.0
  %1738 = vmatprep.subr.mxu0 0.0
  %1739 = vmatpush1.msra.mxu0 0.0
  %1740 = vmatprep.subr.mxu0 0.0
  %1741 = vmatpush1.msra.mxu0 0.0
  %1742 = vmatprep.subr.mxu0 0.0
  %1743 = vmatpush1.msra.mxu0 0.0
  %1744 = vmatprep.subr.mxu0 0.0
  %1745 = vmatpush1.msra.mxu0 0.0
  %1746 = vmatprep.subr.mxu0 0.0
  %1747 = vmatpush1.msra.mxu0 0.0
  %1748 = vmatprep.mubr.f32.mxu0 0.0
  %1749 = vmatmul.mubr.f32.gmra.mrb[0].mxu0 %v1682
  %v1750 = vpop.f32.mrb[0].mxu0
  %v1751 = vadd.f32 0.0, %v1750
  %v1752 = vpop.f32.mrb[0].mxu0
  %1753 = vdwg.mxu0
  %v1754 = vadd.f32 %v1666, %v1751
  %v1756 = vsel %vm116, %v95, 0
  %1758 = vmatprep.subr.mxu0 0.0
  %1759 = vmatpush1.msra.mxu0 %v60
  %1760 = vmatprep.subr.mxu0 0.0
  %1761 = vmatpush1.msra.mxu0 %v61
  %1762 = vmatprep.subr.mxu0 0.0
  %1763 = vmatpush1.msra.mxu0 %v62
  %1764 = vmatprep.subr.mxu0 0.0
  %1765 = vmatpush1.msra.mxu0 %v63
  %1766 = vmatprep.subr.mxu0 0.0
  %1767 = vmatpush1.msra.mxu0 0.0
  %1768 = vmatprep.subr.mxu0 0.0
  %1769 = vmatpush1.msra.mxu0 0.0
  %1770 = vmatprep.subr.mxu0 0.0
  %1771 = vmatpush1.msra.mxu0 0.0
  %1772 = vmatprep.subr.mxu0 0.0
  %1773 = vmatpush1.msra.mxu0 0.0
  %1774 = vmatprep.subr.mxu0 0.0
  %1775 = vmatpush1.msra.mxu0 0.0
  %1776 = vmatprep.subr.mxu0 0.0
  %1777 = vmatpush1.msra.mxu0 0.0
  %1778 = vmatprep.subr.mxu0 0.0
  %1779 = vmatpush1.msra.mxu0 0.0
  %1780 = vmatprep.subr.mxu0 0.0
  %1781 = vmatpush1.msra.mxu0 0.0
  %1782 = vmatprep.subr.mxu0 0.0
  %1783 = vmatpush1.msra.mxu0 0.0
  %1784 = vmatprep.subr.mxu0 0.0
  %1785 = vmatpush1.msra.mxu0 0.0
  %1786 = vmatprep.subr.mxu0 0.0
  %1787 = vmatpush1.msra.mxu0 0.0
  %1788 = vmatprep.subr.mxu0 0.0
  %1789 = vmatpush1.msra.mxu0 0.0
  %1790 = vmatprep.subr.mxu0 0.0
  %1791 = vmatpush1.msra.mxu0 0.0
  %1792 = vmatprep.subr.mxu0 0.0
  %1793 = vmatpush1.msra.mxu0 0.0
  %1794 = vmatprep.subr.mxu0 0.0
  %1795 = vmatpush1.msra.mxu0 0.0
  %1796 = vmatprep.subr.mxu0 0.0
  %1797 = vmatpush1.msra.mxu0 0.0
  %1798 = vmatprep.subr.mxu0 0.0
  %1799 = vmatpush1.msra.mxu0 0.0
  %1800 = vmatprep.subr.mxu0 0.0
  %1801 = vmatpush1.msra.mxu0 0.0
  %1802 = vmatprep.subr.mxu0 0.0
  %1803 = vmatpush1.msra.mxu0 0.0
  %1804 = vmatprep.subr.mxu0 0.0
  %1805 = vmatpush1.msra.mxu0 0.0
  %1806 = vmatprep.subr.mxu0 0.0
  %1807 = vmatpush1.msra.mxu0 0.0
  %1808 = vmatprep.subr.mxu0 0.0
  %1809 = vmatpush1.msra.mxu0 0.0
  %1810 = vmatprep.subr.mxu0 0.0
  %1811 = vmatpush1.msra.mxu0 0.0
  %1812 = vmatprep.subr.mxu0 0.0
  %1813 = vmatpush1.msra.mxu0 0.0
  %1814 = vmatprep.subr.mxu0 0.0
  %1815 = vmatpush1.msra.mxu0 0.0
  %1816 = vmatprep.subr.mxu0 0.0
  %1817 = vmatpush1.msra.mxu0 0.0
  %1818 = vmatprep.subr.mxu0 0.0
  %1819 = vmatpush1.msra.mxu0 0.0
  %1820 = vmatprep.subr.mxu0 0.0
  %1821 = vmatpush1.msra.mxu0 0.0
  %1822 = vmatprep.mubr.f32.mxu0 0.0
  %1823 = vmatmul.mubr.f32.gmra.mrb[0].mxu0 %v1756
  %v1824 = vpop.f32.mrb[0].mxu0
  %v1825 = vadd.f32 0.0, %v1824
  %v1826 = vpop.f32.mrb[0].mxu0
  %1827 = vdwg.mxu0
  %v1828 = vadd.f32 %v1754, %v1825
  %v1830 = vsel %vm116, %v1200, 0
  %1832 = vmatprep.subr.mxu0 0.0
  %1833 = vmatpush1.msra.mxu0 %v64
  %1834 = vmatprep.subr.mxu0 0.0
  %1835 = vmatpush1.msra.mxu0 %v65
  %1836 = vmatprep.subr.mxu0 0.0
  %1837 = vmatpush1.msra.mxu0 %v66
  %1838 = vmatprep.subr.mxu0 0.0
  %1839 = vmatpush1.msra.mxu0 %v67
  %1840 = vmatprep.subr.mxu0 0.0
  %1841 = vmatpush1.msra.mxu0 0.0
  %1842 = vmatprep.subr.mxu0 0.0
  %1843 = vmatpush1.msra.mxu0 0.0
  %1844 = vmatprep.subr.mxu0 0.0
  %1845 = vmatpush1.msra.mxu0 0.0
  %1846 = vmatprep.subr.mxu0 0.0
  %1847 = vmatpush1.msra.mxu0 0.0
  %1848 = vmatprep.subr.mxu0 0.0
  %1849 = vmatpush1.msra.mxu0 0.0
  %1850 = vmatprep.subr.mxu0 0.0
  %1851 = vmatpush1.msra.mxu0 0.0
  %1852 = vmatprep.subr.mxu0 0.0
  %1853 = vmatpush1.msra.mxu0 0.0
  %1854 = vmatprep.subr.mxu0 0.0
  %1855 = vmatpush1.msra.mxu0 0.0
  %1856 = vmatprep.subr.mxu0 0.0
  %1857 = vmatpush1.msra.mxu0 0.0
  %1858 = vmatprep.subr.mxu0 0.0
  %1859 = vmatpush1.msra.mxu0 0.0
  %1860 = vmatprep.subr.mxu0 0.0
  %1861 = vmatpush1.msra.mxu0 0.0
  %1862 = vmatprep.subr.mxu0 0.0
  %1863 = vmatpush1.msra.mxu0 0.0
  %1864 = vmatprep.subr.mxu0 0.0
  %1865 = vmatpush1.msra.mxu0 0.0
  %1866 = vmatprep.subr.mxu0 0.0
  %1867 = vmatpush1.msra.mxu0 0.0
  %1868 = vmatprep.subr.mxu0 0.0
  %1869 = vmatpush1.msra.mxu0 0.0
  %1870 = vmatprep.subr.mxu0 0.0
  %1871 = vmatpush1.msra.mxu0 0.0
  %1872 = vmatprep.subr.mxu0 0.0
  %1873 = vmatpush1.msra.mxu0 0.0
  %1874 = vmatprep.subr.mxu0 0.0
  %1875 = vmatpush1.msra.mxu0 0.0
  %1876 = vmatprep.subr.mxu0 0.0
  %1877 = vmatpush1.msra.mxu0 0.0
  %1878 = vmatprep.subr.mxu0 0.0
  %1879 = vmatpush1.msra.mxu0 0.0
  %1880 = vmatprep.subr.mxu0 0.0
  %1881 = vmatpush1.msra.mxu0 0.0
  %1882 = vmatprep.subr.mxu0 0.0
  %1883 = vmatpush1.msra.mxu0 0.0
  %1884 = vmatprep.subr.mxu0 0.0
  %1885 = vmatpush1.msra.mxu0 0.0
  %1886 = vmatprep.subr.mxu0 0.0
  %1887 = vmatpush1.msra.mxu0 0.0
  %1888 = vmatprep.subr.mxu0 0.0
  %1889 = vmatpush1.msra.mxu0 0.0
  %1890 = vmatprep.subr.mxu0 0.0
  %1891 = vmatpush1.msra.mxu0 0.0
  %1892 = vmatprep.subr.mxu0 0.0
  %1893 = vmatpush1.msra.mxu0 0.0
  %1894 = vmatprep.subr.mxu0 0.0
  %1895 = vmatpush1.msra.mxu0 0.0
  %1896 = vmatprep.mubr.f32.mxu0 0.0
  %1897 = vmatmul.mubr.f32.gmra.mrb[0].mxu0 %v1830
  %v1898 = vpop.f32.mrb[0].mxu0
  %v1899 = vadd.f32 0.0, %v1898
  %v1900 = vpop.f32.mrb[0].mxu0
  %1901 = vdwg.mxu0
  %v1902 = vadd.f32 %v1828, %v1899
  %v1904 = vsel %vm116, %v1201, 0
  %1906 = vmatprep.subr.mxu0 0.0
  %1907 = vmatpush1.msra.mxu0 %v68
  %1908 = vmatprep.subr.mxu0 0.0
  %1909 = vmatpush1.msra.mxu0 %v69
  %1910 = vmatprep.subr.mxu0 0.0
  %1911 = vmatpush1.msra.mxu0 %v70
  %1912 = vmatprep.subr.mxu0 0.0
  %1913 = vmatpush1.msra.mxu0 %v71
  %1914 = vmatprep.subr.mxu0 0.0
  %1915 = vmatpush1.msra.mxu0 0.0
  %1916 = vmatprep.subr.mxu0 0.0
  %1917 = vmatpush1.msra.mxu0 0.0
  %1918 = vmatprep.subr.mxu0 0.0
  %1919 = vmatpush1.msra.mxu0 0.0
  %1920 = vmatprep.subr.mxu0 0.0
  %1921 = vmatpush1.msra.mxu0 0.0
  %1922 = vmatprep.subr.mxu0 0.0
  %1923 = vmatpush1.msra.mxu0 0.0
  %1924 = vmatprep.subr.mxu0 0.0
  %1925 = vmatpush1.msra.mxu0 0.0
  %1926 = vmatprep.subr.mxu0 0.0
  %1927 = vmatpush1.msra.mxu0 0.0
  %1928 = vmatprep.subr.mxu0 0.0
  %1929 = vmatpush1.msra.mxu0 0.0
  %1930 = vmatprep.subr.mxu0 0.0
  %1931 = vmatpush1.msra.mxu0 0.0
  %1932 = vmatprep.subr.mxu0 0.0
  %1933 = vmatpush1.msra.mxu0 0.0
  %1934 = vmatprep.subr.mxu0 0.0
  %1935 = vmatpush1.msra.mxu0 0.0
  %1936 = vmatprep.subr.mxu0 0.0
  %1937 = vmatpush1.msra.mxu0 0.0
  %1938 = vmatprep.subr.mxu0 0.0
  %1939 = vmatpush1.msra.mxu0 0.0
  %1940 = vmatprep.subr.mxu0 0.0
  %1941 = vmatpush1.msra.mxu0 0.0
  %1942 = vmatprep.subr.mxu0 0.0
  %1943 = vmatpush1.msra.mxu0 0.0
  %1944 = vmatprep.subr.mxu0 0.0
  %1945 = vmatpush1.msra.mxu0 0.0
  %1946 = vmatprep.subr.mxu0 0.0
  %1947 = vmatpush1.msra.mxu0 0.0
  %1948 = vmatprep.subr.mxu0 0.0
  %1949 = vmatpush1.msra.mxu0 0.0
  %1950 = vmatprep.subr.mxu0 0.0
  %1951 = vmatpush1.msra.mxu0 0.0
  %1952 = vmatprep.subr.mxu0 0.0
  %1953 = vmatpush1.msra.mxu0 0.0
  %1954 = vmatprep.subr.mxu0 0.0
  %1955 = vmatpush1.msra.mxu0 0.0
  %1956 = vmatprep.subr.mxu0 0.0
  %1957 = vmatpush1.msra.mxu0 0.0
  %1958 = vmatprep.subr.mxu0 0.0
  %1959 = vmatpush1.msra.mxu0 0.0
  %1960 = vmatprep.subr.mxu0 0.0
  %1961 = vmatpush1.msra.mxu0 0.0
  %1962 = vmatprep.subr.mxu0 0.0
  %1963 = vmatpush1.msra.mxu0 0.0
  %1964 = vmatprep.subr.mxu0 0.0
  %1965 = vmatpush1.msra.mxu0 0.0
  %1966 = vmatprep.subr.mxu0 0.0
  %1967 = vmatpush1.msra.mxu0 0.0
  %1968 = vmatprep.subr.mxu0 0.0
  %1969 = vmatpush1.msra.mxu0 0.0
  %1970 = vmatprep.mubr.f32.mxu0 0.0
  %1971 = vmatmul.mubr.f32.gmra.mrb[0].mxu0 %v1904
  %v1972 = vpop.f32.mrb[0].mxu0
  %v1973 = vadd.f32 0.0, %v1972
  %v1974 = vpop.f32.mrb[0].mxu0
  %1975 = vdwg.mxu0
  %v1976 = vadd.f32 %v1902, %v1973
  %v1985 = vsel %vm912, %v1203, %v1202
  %v1986 = vsel %vm914, %v1204, %v1985
  %v1987 = vsel %vm916, %v1205, %v1986
  %v1988 = vsel %vm918, %v1206, %v1987
  %v1989 = vsel %vm920, %v1207, %v1988
  %v1990 = vsel %vm922, %v1208, %v1989
  %v1991 = vsel %vm924, %v1209, %v1990
  %v1992 = vsel %vm116, %v1991, 0
  %1994 = vmatprep.subr.mxu0 0.0
  %1995 = vmatpush1.msra.mxu0 %v72
  %1996 = vmatprep.subr.mxu0 0.0
  %1997 = vmatpush1.msra.mxu0 %v73
  %1998 = vmatprep.subr.mxu0 0.0
  %1999 = vmatpush1.msra.mxu0 %v74
  %2000 = vmatprep.subr.mxu0 0.0
  %2001 = vmatpush1.msra.mxu0 %v75
  %2002 = vmatprep.subr.mxu0 0.0
  %2003 = vmatpush1.msra.mxu0 0.0
  %2004 = vmatprep.subr.mxu0 0.0
  %2005 = vmatpush1.msra.mxu0 0.0
  %2006 = vmatprep.subr.mxu0 0.0
  %2007 = vmatpush1.msra.mxu0 0.0
  %2008 = vmatprep.subr.mxu0 0.0
  %2009 = vmatpush1.msra.mxu0 0.0
  %2010 = vmatprep.subr.mxu0 0.0
  %2011 = vmatpush1.msra.mxu0 0.0
  %2012 = vmatprep.subr.mxu0 0.0
  %2013 = vmatpush1.msra.mxu0 0.0
  %2014 = vmatprep.subr.mxu0 0.0
  %2015 = vmatpush1.msra.mxu0 0.0
  %2016 = vmatprep.subr.mxu0 0.0
  %2017 = vmatpush1.msra.mxu0 0.0
  %2018 = vmatprep.subr.mxu0 0.0
  %2019 = vmatpush1.msra.mxu0 0.0
  %2020 = vmatprep.subr.mxu0 0.0
  %2021 = vmatpush1.msra.mxu0 0.0
  %2022 = vmatprep.subr.mxu0 0.0
  %2023 = vmatpush1.msra.mxu0 0.0
  %2024 = vmatprep.subr.mxu0 0.0
  %2025 = vmatpush1.msra.mxu0 0.0
  %2026 = vmatprep.subr.mxu0 0.0
  %2027 = vmatpush1.msra.mxu0 0.0
  %2028 = vmatprep.subr.mxu0 0.0
  %2029 = vmatpush1.msra.mxu0 0.0
  %2030 = vmatprep.subr.mxu0 0.0
  %2031 = vmatpush1.msra.mxu0 0.0
  %2032 = vmatprep.subr.mxu0 0.0
  %2033 = vmatpush1.msra.mxu0 0.0
  %2034 = vmatprep.subr.mxu0 0.0
  %2035 = vmatpush1.msra.mxu0 0.0
  %2036 = vmatprep.subr.mxu0 0.0
  %2037 = vmatpush1.msra.mxu0 0.0
  %2038 = vmatprep.subr.mxu0 0.0
  %2039 = vmatpush1.msra.mxu0 0.0
  %2040 = vmatprep.subr.mxu0 0.0
  %2041 = vmatpush1.msra.mxu0 0.0
  %2042 = vmatprep.subr.mxu0 0.0
  %2043 = vmatpush1.msra.mxu0 0.0
  %2044 = vmatprep.subr.mxu0 0.0
  %2045 = vmatpush1.msra.mxu0 0.0
  %2046 = vmatprep.subr.mxu0 0.0
  %2047 = vmatpush1.msra.mxu0 0.0
  %2048 = vmatprep.subr.mxu0 0.0
  %2049 = vmatpush1.msra.mxu0 0.0
  %2050 = vmatprep.subr.mxu0 0.0
  %2051 = vmatpush1.msra.mxu0 0.0
  %2052 = vmatprep.subr.mxu0 0.0
  %2053 = vmatpush1.msra.mxu0 0.0
  %2054 = vmatprep.subr.mxu0 0.0
  %2055 = vmatpush1.msra.mxu0 0.0
  %2056 = vmatprep.subr.mxu0 0.0
  %2057 = vmatpush1.msra.mxu0 0.0
  %2058 = vmatprep.mubr.f32.mxu0 0.0
  %2059 = vmatmul.mubr.f32.gmra.mrb[0].mxu0 %v1992
  %v2060 = vpop.f32.mrb[0].mxu0
  %v2061 = vadd.f32 0.0, %v2060
  %v2062 = vpop.f32.mrb[0].mxu0
  %2063 = vdwg.mxu0
  %v2064 = vadd.f32 %v1976, %v2061
  %v2066 = vsel %vm116, %v1210, 0
  %2068 = vmatprep.subr.mxu0 0.0
  %2069 = vmatpush1.msra.mxu0 %v76
  %2070 = vmatprep.subr.mxu0 0.0
  %2071 = vmatpush1.msra.mxu0 %v77
  %2072 = vmatprep.subr.mxu0 0.0
  %2073 = vmatpush1.msra.mxu0 %v78
  %2074 = vmatprep.subr.mxu0 0.0
  %2075 = vmatpush1.msra.mxu0 %v79
  %2076 = vmatprep.subr.mxu0 0.0
  %2077 = vmatpush1.msra.mxu0 0.0
  %2078 = vmatprep.subr.mxu0 0.0
  %2079 = vmatpush1.msra.mxu0 0.0
  %2080 = vmatprep.subr.mxu0 0.0
  %2081 = vmatpush1.msra.mxu0 0.0
  %2082 = vmatprep.subr.mxu0 0.0
  %2083 = vmatpush1.msra.mxu0 0.0
  %2084 = vmatprep.subr.mxu0 0.0
  %2085 = vmatpush1.msra.mxu0 0.0
  %2086 = vmatprep.subr.mxu0 0.0
  %2087 = vmatpush1.msra.mxu0 0.0
  %2088 = vmatprep.subr.mxu0 0.0
  %2089 = vmatpush1.msra.mxu0 0.0
  %2090 = vmatprep.subr.mxu0 0.0
  %2091 = vmatpush1.msra.mxu0 0.0
  %2092 = vmatprep.subr.mxu0 0.0
  %2093 = vmatpush1.msra.mxu0 0.0
  %2094 = vmatprep.subr.mxu0 0.0
  %2095 = vmatpush1.msra.mxu0 0.0
  %2096 = vmatprep.subr.mxu0 0.0
  %2097 = vmatpush1.msra.mxu0 0.0
  %2098 = vmatprep.subr.mxu0 0.0
  %2099 = vmatpush1.msra.mxu0 0.0
  %2100 = vmatprep.subr.mxu0 0.0
  %2101 = vmatpush1.msra.mxu0 0.0
  %2102 = vmatprep.subr.mxu0 0.0
  %2103 = vmatpush1.msra.mxu0 0.0
  %2104 = vmatprep.subr.mxu0 0.0
  %2105 = vmatpush1.msra.mxu0 0.0
  %2106 = vmatprep.subr.mxu0 0.0
  %2107 = vmatpush1.msra.mxu0 0.0
  %2108 = vmatprep.subr.mxu0 0.0
  %2109 = vmatpush1.msra.mxu0 0.0
  %2110 = vmatprep.subr.mxu0 0.0
  %2111 = vmatpush1.msra.mxu0 0.0
  %2112 = vmatprep.subr.mxu0 0.0
  %2113 = vmatpush1.msra.mxu0 0.0
  %2114 = vmatprep.subr.mxu0 0.0
  %2115 = vmatpush1.msra.mxu0 0.0
  %2116 = vmatprep.subr.mxu0 0.0
  %2117 = vmatpush1.msra.mxu0 0.0
  %2118 = vmatprep.subr.mxu0 0.0
  %2119 = vmatpush1.msra.mxu0 0.0
  %2120 = vmatprep.subr.mxu0 0.0
  %2121 = vmatpush1.msra.mxu0 0.0
  %2122 = vmatprep.subr.mxu0 0.0
  %2123 = vmatpush1.msra.mxu0 0.0
  %2124 = vmatprep.subr.mxu0 0.0
  %2125 = vmatpush1.msra.mxu0 0.0
  %2126 = vmatprep.subr.mxu0 0.0
  %2127 = vmatpush1.msra.mxu0 0.0
  %2128 = vmatprep.subr.mxu0 0.0
  %2129 = vmatpush1.msra.mxu0 0.0
  %2130 = vmatprep.subr.mxu0 0.0
  %2131 = vmatpush1.msra.mxu0 0.0
  %2132 = vmatprep.mubr.f32.mxu0 0.0
  %2133 = vmatmul.mubr.f32.gmra.mrb[0].mxu0 %v2066
  %v2134 = vpop.f32.mrb[0].mxu0
  %v2135 = vadd.f32 0.0, %v2134
  %v2136 = vpop.f32.mrb[0].mxu0
  %2137 = vdwg.mxu0
  %v2138 = vadd.f32 %v2064, %v2135
  %v2139 = vlaneseq
  %v2140 = vshrl.u32 %v2139, 7
  %v2141 = vsub.s32 4, %v2140
  %v2142 = vrot.slane %v88, %v2141
  %v2143 = vadd.f32 %v2138, %v2142
  %v2144 = vmax.f32 %v2143, 0.0
  %v2145 = vlaneseq
  %v2146 = vshrl.u32 %v2145, 7
  %v2147 = vsub.s32 5, %v2146
  %v2148 = vrot.slane %v88, %v2147
  %v2150 = vsel %vm116, %v2144, 0
  %2152 = vmatprep.subr.mxu0 0.0
  %2153 = vmatpush1.msra.mxu0 %v80
  %2154 = vmatprep.subr.mxu0 0.0
  %2155 = vmatpush1.msra.mxu0 %v81
  %2156 = vmatprep.subr.mxu0 0.0
  %2157 = vmatpush1.msra.mxu0 %v82
  %2158 = vmatprep.subr.mxu0 0.0
  %2159 = vmatpush1.msra.mxu0 %v83
  %2160 = vmatprep.subr.mxu0 0.0
  %2161 = vmatpush1.msra.mxu0 0.0
  %2162 = vmatprep.subr.mxu0 0.0
  %2163 = vmatpush1.msra.mxu0 0.0
  %2164 = vmatprep.subr.mxu0 0.0
  %2165 = vmatpush1.msra.mxu0 0.0
  %2166 = vmatprep.subr.mxu0 0.0
  %2167 = vmatpush1.msra.mxu0 0.0
  %2168 = vmatprep.subr.mxu0 0.0
  %2169 = vmatpush1.msra.mxu0 0.0
  %2170 = vmatprep.subr.mxu0 0.0
  %2171 = vmatpush1.msra.mxu0 0.0
  %2172 = vmatprep.subr.mxu0 0.0
  %2173 = vmatpush1.msra.mxu0 0.0
  %2174 = vmatprep.subr.mxu0 0.0
  %2175 = vmatpush1.msra.mxu0 0.0
  %2176 = vmatprep.subr.mxu0 0.0
  %2177 = vmatpush1.msra.mxu0 0.0
  %2178 = vmatprep.subr.mxu0 0.0
  %2179 = vmatpush1.msra.mxu0 0.0
  %2180 = vmatprep.subr.mxu0 0.0
  %2181 = vmatpush1.msra.mxu0 0.0
  %2182 = vmatprep.subr.mxu0 0.0
  %2183 = vmatpush1.msra.mxu0 0.0
  %2184 = vmatprep.subr.mxu0 0.0
  %2185 = vmatpush1.msra.mxu0 0.0
  %2186 = vmatprep.subr.mxu0 0.0
  %2187 = vmatpush1.msra.mxu0 0.0
  %2188 = vmatprep.subr.mxu0 0.0
  %2189 = vmatpush1.msra.mxu0 0.0
  %2190 = vmatprep.subr.mxu0 0.0
  %2191 = vmatpush1.msra.mxu0 0.0
  %2192 = vmatprep.subr.mxu0 0.0
  %2193 = vmatpush1.msra.mxu0 0.0
  %2194 = vmatprep.subr.mxu0 0.0
  %2195 = vmatpush1.msra.mxu0 0.0
  %2196 = vmatprep.subr.mxu0 0.0
  %2197 = vmatpush1.msra.mxu0 0.0
  %2198 = vmatprep.subr.mxu0 0.0
  %2199 = vmatpush1.msra.mxu0 0.0
  %2200 = vmatprep.subr.mxu0 0.0
  %2201 = vmatpush1.msra.mxu0 0.0
  %2202 = vmatprep.subr.mxu0 0.0
  %2203 = vmatpush1.msra.mxu0 0.0
  %2204 = vmatprep.subr.mxu0 0.0
  %2205 = vmatpush1.msra.mxu0 0.0
  %2206 = vmatprep.subr.mxu0 0.0
  %2207 = vmatpush1.msra.mxu0 0.0
  %2208 = vmatprep.subr.mxu0 0.0
  %2209 = vmatpush1.msra.mxu0 0.0
  %2210 = vmatprep.subr.mxu0 0.0
  %2211 = vmatpush1.msra.mxu0 0.0
  %2212 = vmatprep.subr.mxu0 0.0
  %2213 = vmatpush1.msra.mxu0 0.0
  %2214 = vmatprep.subr.mxu0 0.0
  %2215 = vmatpush1.msra.mxu0 0.0
  %2216 = vmatprep.mubr.f32.mxu0 0.0
  %2217 = vmatmul.mubr.f32.gmra.mrb[0].mxu0 %v2150
  %v2218 = vpop.f32.mrb[0].mxu0
  %v2219 = vadd.f32 %v2148, %v2218
  %v2220 = vpop.f32.mrb[0].mxu0
  %2221 = vdwg.mxu0
  %v2222 = vmax.f32 %v2219, 0.0
  %v2223 = vlaneseq
  %v2224 = vshrl.u32 %v2223, 7
  %v2225 = vsub.s32 6, %v2224
  %v2226 = vrot.slane %v88, %v2225
  %v2228 = vsel %vm116, %v2222, 0
  %2230 = vmatprep.subr.mxu0 0.0
  %2231 = vmatpush1.msra.mxu0 %v84
  %2232 = vmatprep.subr.mxu0 0.0
  %2233 = vmatpush1.msra.mxu0 %v85
  %2234 = vmatprep.subr.mxu0 0.0
  %2235 = vmatpush1.msra.mxu0 %v86
  %2236 = vmatprep.subr.mxu0 0.0
  %2237 = vmatpush1.msra.mxu0 %v87
  %2238 = vmatprep.subr.mxu0 0.0
  %2239 = vmatpush1.msra.mxu0 0.0
  %2240 = vmatprep.subr.mxu0 0.0
  %2241 = vmatpush1.msra.mxu0 0.0
  %2242 = vmatprep.subr.mxu0 0.0
  %2243 = vmatpush1.msra.mxu0 0.0
  %2244 = vmatprep.subr.mxu0 0.0
  %2245 = vmatpush1.msra.mxu0 0.0
  %2246 = vmatprep.subr.mxu0 0.0
  %2247 = vmatpush1.msra.mxu0 0.0
  %2248 = vmatprep.subr.mxu0 0.0
  %2249 = vmatpush1.msra.mxu0 0.0
  %2250 = vmatprep.subr.mxu0 0.0
  %2251 = vmatpush1.msra.mxu0 0.0
  %2252 = vmatprep.subr.mxu0 0.0
  %2253 = vmatpush1.msra.mxu0 0.0
  %2254 = vmatprep.subr.mxu0 0.0
  %2255 = vmatpush1.msra.mxu0 0.0
  %2256 = vmatprep.subr.mxu0 0.0
  %2257 = vmatpush1.msra.mxu0 0.0
  %2258 = vmatprep.subr.mxu0 0.0
  %2259 = vmatpush1.msra.mxu0 0.0
  %2260 = vmatprep.subr.mxu0 0.0
  %2261 = vmatpush1.msra.mxu0 0.0
  %2262 = vmatprep.subr.mxu0 0.0
  %2263 = vmatpush1.msra.mxu0 0.0
  %2264 = vmatprep.subr.mxu0 0.0
  %2265 = vmatpush1.msra.mxu0 0.0
  %2266 = vmatprep.subr.mxu0 0.0
  %2267 = vmatpush1.msra.mxu0 0.0
  %2268 = vmatprep.subr.mxu0 0.0
  %2269 = vmatpush1.msra.mxu0 0.0
  %2270 = vmatprep.subr.mxu0 0.0
  %2271 = vmatpush1.msra.mxu0 0.0
  %2272 = vmatprep.subr.mxu0 0.0
  %2273 = vmatpush1.msra.mxu0 0.0
  %2274 = vmatprep.subr.mxu0 0.0
  %2275 = vmatpush1.msra.mxu0 0.0
  %2276 = vmatprep.subr.mxu0 0.0
  %2277 = vmatpush1.msra.mxu0 0.0
  %2278 = vmatprep.subr.mxu0 0.0
  %2279 = vmatpush1.msra.mxu0 0.0
  %2280 = vmatprep.subr.mxu0 0.0
  %2281 = vmatpush1.msra.mxu0 0.0
  %2282 = vmatprep.subr.mxu0 0.0
  %2283 = vmatpush1.msra.mxu0 0.0
  %2284 = vmatprep.subr.mxu0 0.0
  %2285 = vmatpush1.msra.mxu0 0.0
  %2286 = vmatprep.subr.mxu0 0.0
  %2287 = vmatpush1.msra.mxu0 0.0
  %2288 = vmatprep.subr.mxu0 0.0
  %2289 = vmatpush1.msra.mxu0 0.0
  %2290 = vmatprep.subr.mxu0 0.0
  %2291 = vmatpush1.msra.mxu0 0.0
  %2292 = vmatprep.subr.mxu0 0.0
  %2293 = vmatpush1.msra.mxu0 0.0
  %2294 = vmatprep.mubr.f32.mxu0 0.0
  %2295 = vmatmul.mubr.f32.gmra.mrb[0].mxu0 %v2228
  %v2296 = vpop.f32.mrb[0].mxu0
  %v2297 = vadd.f32 %v2226, %v2296
  %v2298 = vpop.f32.mrb[0].mxu0
  %2299 = vdwg.mxu0
  %v2300 = vmax.f32 %v2297, 0.0
  %v2301 = vlaneseq
  %v2302 = vshrl.u32 %v2301, 7
  %v2303 = vsub.s32 7, %v2302
  %v2304 = vrot.slane %v88, %v2303
  %v2305 = vmul.f32 %v2300, %v2304
  %v2306 = vsel %vm116, %v2305, 0.0
  %2307 = vadd.xlane.f32.xlu0 %v2306
  %v2308 = vpop.xlane.xlu0 %2307
  %v2309 = vlaneseq
  %v2310 = vshrl.u32 %v2309, 7
  %v2311 = vsub.s32 0, %v2310
  %v2312 = vrot.slane %v89, %v2311
  %v2313 = vadd.f32 %v2308, %v2312
  %vm2314 = vcmask 7168
  %2315 = vst.msk [vmem:[%s5] sm:$0xff] %vm2314, %v2313
  // Predicated region
  $region22: #{tpu_custom_call.1} parent=0 // pred_check
    _
  $region23: #{tpu_custom_call.1} parent=0 // pred_check_branch
    %2317 = sbr.rel (0) target = $region25
  $region24: #{tpu_custom_call.1} parent=0 // pred_region
    _
  $region25: #{tpu_custom_call.1} parent=0 // pred_fallthru
    _
  // Predicated region
  $region26: #{tpu_custom_call.1} parent=0 // pred_check
    _
  $region27: #{tpu_custom_call.1} parent=0 // pred_check_branch
    %2319 = sbr.rel (0) target = $region29
  $region28: #{tpu_custom_call.1} parent=0 // pred_region
    _
  $region29: #{tpu_custom_call.1} parent=0 // pred_fallthru
    _

</llo_original>
